<compile_context>
chip_gen: v5e
topology: v5e:2x2
jax: 0.10.0
libtpu: 0.0.40
codegen_flags: <defaults>
</compile_context>

<pallas_src>
import functools

import jax
import jax.numpy as jnp
from jax.experimental import pallas as pl
from jax.experimental.pallas import tpu as pltpu

_NEG_LARGE = -1e30  # large finite negative -> exp underflows to exactly 0 in f32


def _attention_kernel(enc_ref, dec_ref, w1_ref, w2_ref, b12_ref, v_ref,
                      ctx_ref, attn_ref, *, p_valid):
    Bb, Pp, E = enc_ref.shape
    A = w1_ref.shape[1]

    enc = enc_ref[...]                                       # (Bb, Pp, E)
    dec = dec_ref[...]                                       # (Bb, D)

    # Encoder projection: one (Bb*Pp, E) x (E, A) MXU matmul.  Pp is a multiple of
    # 128 (sublane aligned), so collapsing (Bb, Pp) is layout-free on TPU.
    enc_proj = jnp.dot(enc.reshape(Bb * Pp, E), w1_ref[...],
                       preferred_element_type=jnp.float32).reshape(Bb, Pp, A)

    # Decoder projection: one (Bb, D) x (D, A) matmul; b1 + b2 pre-folded.
    dec_proj = jnp.dot(dec, w2_ref[...],
                       preferred_element_type=jnp.float32) + b12_ref[...]   # (Bb, A)

    s = jnp.tanh(enc_proj + dec_proj[:, None, :])            # (Bb, Pp, A), f32

    # V projection (A -> 1) as a lane reduce.  V bias dropped (softmax shift-invariant).
    scores = jnp.sum(s * v_ref[...], axis=-1)                # (Bb, Pp), lane-dense f32

    # Mask padded pixel positions so their softmax weight is exactly 0.
    if p_valid < Pp:
        col = jax.lax.broadcasted_iota(jnp.int32, (Bb, Pp), 1)
        scores = jnp.where(col < p_valid, scores, _NEG_LARGE)

    # Softmax over the pixel axis on a lane-dense tile, in f32, exact normalization.
    m = jnp.max(scores, axis=-1, keepdims=True)              # (Bb, 1)
    e = jnp.exp(scores - m)                                   # (Bb, Pp)
    w = e / jnp.sum(e, axis=-1, keepdims=True)                # (Bb, Pp)

    attn_ref[...] = w.astype(attn_ref.dtype)

    # Context: VPU multiply + sublane (XLU) reduce, weights kept in f32.
    # TODO(synk): for very large Bb*Pp, chunk the pixel axis with lax.fori_loop to
    # bound the (Bb, Pp, A)/(Bb, Pp, E) live ranges; unnecessary at these block sizes.
    ctx = jnp.sum(w[:, :, None] * enc.astype(jnp.float32), axis=1)   # (Bb, E)
    ctx_ref[...] = ctx.astype(ctx_ref.dtype)


def attention_forward(enc, dec, w1, b1, w2, b2, v, bv=None, *, block_b=None):
    """Additive attention forward.

    `bv` (V bias) is accepted for API parity but is a mathematical no-op for the
    outputs (softmax shift invariance), so it is not used.
    Returns (context (B, 1, E), attention weights (B, P)).
    """
    B, P, E = enc.shape
    D = dec.shape[1]
    A = w1.shape[1]

    # Pad the pixel axis to a lane-dense multiple of 128.
    Pp = max(128, ((P + 127) // 128) * 128)

    # Rough per-batch-row and fixed VMEM cost (f32 compute, double-buffered I/O).
    in_bytes = jnp.dtype(enc.dtype).itemsize
    per_row = (2 * Pp * E * in_bytes        # enc block (double-buffered DMA)
               + 2 * Pp * A * 4             # enc_proj + tanh intermediate
               + 2 * (Pp + E + D) * 4)      # attn/ctx outputs + dec block
    fixed = 2 * (E * A + D * A + 2 * A) * 4  # resident weights/bias (double-buffered)

    # Batch block: largest multiple of 8 under a conservative cross-generation budget
    # (fits v7x's 64 MiB physical / v5e's raised scoped limit), capped at 256 and at
    # the (8-rounded) batch so tiny batches don't over-pad.  Tune per chip if needed;
    # on v7x keep the grid length >= 2 so both TensorCores get work.
    if block_b is None:
        budget = 24 * 1024 * 1024
        bb = max(8, ((budget - fixed) // max(per_row, 1)) // 8 * 8)
        block_b = int(min(bb, 256))
    Bb = min(int(block_b), ((B + 7) // 8) * 8)
    Bb = max(8, (Bb // 8) * 8)
    Bp = ((B + Bb - 1) // Bb) * Bb

    enc_p, dec_p = enc, dec
    if Bp != B or Pp != P:
        enc_p = jnp.pad(enc, ((0, Bp - B), (0, Pp - P), (0, 0)))
    if Bp != B:
        dec_p = jnp.pad(dec, ((0, Bp - B), (0, 0)))

    b12 = (b1 + b2).reshape(1, A)   # fold the two linear biases into one row
    v2 = v.reshape(1, A)

    # Explicit scoped-VMEM limit: v5e default is 16 MiB; cap below v7x's 64 MiB physical.
    vmem_limit = int(min(max(2 * (fixed + Bb * per_row), 32 * 1024 * 1024),
                         48 * 1024 * 1024))

    kernel = functools.partial(_attention_kernel, p_valid=P)

    ctx, attn = pl.pallas_call(
        kernel,
        out_shape=(jax.ShapeDtypeStruct((Bp, E), enc.dtype),    # lane/sublane-dense ctx slab
                   jax.ShapeDtypeStruct((Bp, Pp), enc.dtype)),  # lane-dense attn slab
        grid_spec=pltpu.PrefetchScalarGridSpec(
            num_scalar_prefetch=0,
            grid=(Bp // Bb,),
            in_specs=[
                pl.BlockSpec((Bb, Pp, E), lambda b: (b, 0, 0)),  # enc block
                pl.BlockSpec((Bb, D),     lambda b: (b, 0)),     # dec block
                pl.BlockSpec((E, A),      lambda b: (0, 0)),     # W1^T (resident)
                pl.BlockSpec((D, A),      lambda b: (0, 0)),     # W2^T (resident)
                pl.BlockSpec((1, A),      lambda b: (0, 0)),     # b1 + b2
                pl.BlockSpec((1, A),      lambda b: (0, 0)),     # V row vector
            ],
            out_specs=(pl.BlockSpec((Bb, E),  lambda b: (b, 0)),
                       pl.BlockSpec((Bb, Pp), lambda b: (b, 0))),
        ),
        compiler_params=pltpu.CompilerParams(
            dimension_semantics=("parallel",),
            vmem_limit_bytes=vmem_limit),
    )(enc_p, dec_p, w1, w2, b12, v2)

    context = ctx[:B][:, None, :]     # (B, 1, E)
    weights = attn[:B, :P]            # (B, P)
    return context, weights


def attention_reference(enc, dec, w1, b1, w2, b2, v, bv):
    # Pure-JAX reference mirroring the PyTorch forward (V bias included).
    enc_proj = enc @ w1 + b1                      # (B, P, A)
    dec_proj = dec @ w2 + b2                      # (B, A)
    s = jnp.tanh(dec_proj[:, None, :] + enc_proj)
    scores = jnp.sum(s * v, axis=-1) + bv[0, 0]   # (B, P)
    weights = jax.nn.softmax(scores, axis=1)
    context = jnp.sum(weights[:, :, None] * enc, axis=1)[:, None, :]
    return context, weights


if __name__ == "__main__":
    # Small synthetic shapes consistent with the module.
    B, P, E, D, A = 2, 16, 32, 32, 32   # batch, num_pixels, enc_dim, dec_dim, attention_dim

    key = jax.random.PRNGKey(0)
    k = jax.random.split(key, 8)
    enc = jax.random.normal(k[0], (B, P, E), dtype=jnp.float32)
    dec = jax.random.normal(k[1], (B, D), dtype=jnp.float32)

    # Deterministic synthetic parameters (nn.Linear weights stored transposed).
    w1 = 0.1 * jax.random.normal(k[2], (E, A), dtype=jnp.float32)   # torch W1.weight.T
    b1 = 0.1 * jax.random.normal(k[3], (1, A), dtype=jnp.float32)
    w2 = 0.1 * jax.random.normal(k[4], (D, A), dtype=jnp.float32)   # torch W2.weight.T
    b2 = 0.1 * jax.random.normal(k[5], (1, A), dtype=jnp.float32)
    v  = 0.1 * jax.random.normal(k[6], (1, A), dtype=jnp.float32)   # torch V.weight (1, A)
    bv = 0.1 * jax.random.normal(k[7], (1, 1), dtype=jnp.float32)   # torch V.bias

    ctx, attn = attention_forward(enc, dec, w1, b1, w2, b2, v, bv)
    jax.block_until_ready((ctx, attn))

    ctx_ref, attn_ref = attention_reference(enc, dec, w1, b1, w2, b2, v, bv)

    assert ctx.shape == (B, 1, E) and attn.shape == (B, P)
    # Exact in-kernel normalization: each attention row is a probability distribution.
    assert jnp.allclose(jnp.sum(attn, axis=1), 1.0, atol=1e-5)
    assert bool(jnp.all(attn >= 0.0))
    # Tolerances allow for default-precision MXU (bf16-pass) differences between the
    # Pallas matmuls and the XLA reference matmuls on f32 inputs.
    assert jnp.allclose(ctx, ctx_ref, atol=2e-3, rtol=2e-3)
    assert jnp.allclose(attn, attn_ref, atol=2e-3, rtol=2e-3)

    print("KERNEL_OK")
</pallas_src>

<mosaic_0001>
module attributes {stable_mosaic.version = 11 : i64} {
  func.func @_attention_kernel(%arg0: i32, %arg1: memref<8x128x32xf32, #tpu.memory_space<vmem>>, %arg2: memref<8x32xf32, #tpu.memory_space<vmem>>, %arg3: memref<32x32xf32, #tpu.memory_space<vmem>>, %arg4: memref<32x32xf32, #tpu.memory_space<vmem>>, %arg5: memref<1x32xf32, #tpu.memory_space<vmem>>, %arg6: memref<1x32xf32, #tpu.memory_space<vmem>>, %arg7: memref<8x32xf32, #tpu.memory_space<vmem>>, %arg8: memref<8x128xf32, #tpu.memory_space<vmem>>) attributes {dimension_semantics = [#tpu.dimension_semantics<parallel>], iteration_bounds = array<i64: 1>, scalar_prefetch = 0 : i64, scratch_operands = 0 : i64, tpu.core_type = #tpu.core_type<tc>, window_params = [{transform_indices = @transform_0, window_bounds = array<i64: 8, 128, 32>}, {transform_indices = @transform_1, window_bounds = array<i64: 8, 32>}, {pipeline_mode = #tpu.pipeline_mode<synchronous>, transform_indices = @transform_2, window_bounds = array<i64: 32, 32>}, {pipeline_mode = #tpu.pipeline_mode<synchronous>, transform_indices = @transform_3, window_bounds = array<i64: 32, 32>}, {pipeline_mode = #tpu.pipeline_mode<synchronous>, transform_indices = @transform_4, window_bounds = array<i64: 1, 32>}, {pipeline_mode = #tpu.pipeline_mode<synchronous>, transform_indices = @transform_5, window_bounds = array<i64: 1, 32>}, {transform_indices = @transform_6, window_bounds = array<i64: 8, 32>}, {transform_indices = @transform_7, window_bounds = array<i64: 8, 128>}]} {
    %c0 = arith.constant 0 : index
    %c0_0 = arith.constant 0 : index
    %c0_1 = arith.constant 0 : index
    %0 = vector.load %arg1[%c0, %c0_0, %c0_1] : memref<8x128x32xf32, #tpu.memory_space<vmem>>, vector<8x128x32xf32>
    %c0_2 = arith.constant 0 : index
    %c0_3 = arith.constant 0 : index
    %1 = vector.load %arg2[%c0_2, %c0_3] : memref<8x32xf32, #tpu.memory_space<vmem>>, vector<8x32xf32>
    %2 = vector.shape_cast %0 : vector<8x128x32xf32> to vector<1024x32xf32>
    %c0_4 = arith.constant 0 : index
    %c0_5 = arith.constant 0 : index
    %3 = vector.load %arg3[%c0_4, %c0_5] : memref<32x32xf32, #tpu.memory_space<vmem>>, vector<32x32xf32>
    %cst = arith.constant dense<0.000000e+00> : vector<1024x32xf32>
    %4 = tpu.matmul %2, %3, %cst {dimension_numbers = #tpu.dot_dimension_numbers<[1], [0], [0], [1], [0, 0, 1, 1], [], []>} : vector<1024x32xf32>, vector<32x32xf32>, vector<1024x32xf32> -> vector<1024x32xf32>
    %5 = vector.shape_cast %4 : vector<1024x32xf32> to vector<8x128x32xf32>
    %c0_6 = arith.constant 0 : index
    %c0_7 = arith.constant 0 : index
    %6 = vector.load %arg4[%c0_6, %c0_7] : memref<32x32xf32, #tpu.memory_space<vmem>>, vector<32x32xf32>
    %cst_8 = arith.constant dense<0.000000e+00> : vector<8x32xf32>
    %7 = tpu.matmul %1, %6, %cst_8 {dimension_numbers = #tpu.dot_dimension_numbers<[1], [0], [0], [1], [0, 0, 1, 1], [], []>} : vector<8x32xf32>, vector<32x32xf32>, vector<8x32xf32> -> vector<8x32xf32>
    %c0_9 = arith.constant 0 : index
    %c0_10 = arith.constant 0 : index
    %8 = vector.load %arg5[%c0_9, %c0_10] : memref<1x32xf32, #tpu.memory_space<vmem>>, vector<1x32xf32>
    %9 = vector.broadcast %8 : vector<1x32xf32> to vector<8x32xf32>
    %10 = arith.addf %7, %9 : vector<8x32xf32>
    %11 = vector.shape_cast %10 : vector<8x32xf32> to vector<8x1x32xf32>
    %12 = vector.broadcast %11 : vector<8x1x32xf32> to vector<8x128x32xf32>
    %13 = arith.addf %5, %12 : vector<8x128x32xf32>
    %14 = math.tanh %13 : vector<8x128x32xf32>
    %c0_11 = arith.constant 0 : index
    %c0_12 = arith.constant 0 : index
    %15 = vector.load %arg6[%c0_11, %c0_12] : memref<1x32xf32, #tpu.memory_space<vmem>>, vector<1x32xf32>
    %16 = vector.shape_cast %15 : vector<1x32xf32> to vector<1x1x32xf32>
    %17 = vector.broadcast %16 : vector<1x1x32xf32> to vector<8x128x32xf32>
    %18 = arith.mulf %14, %17 : vector<8x128x32xf32>
    %cst_13 = arith.constant dense<0.000000e+00> : vector<8x128xf32>
    %19 = vector.multi_reduction <add>, %18, %cst_13 [2] : vector<8x128x32xf32> to vector<8x128xf32>
    %20 = tpu.iota {dimensions = array<i32: 1>} : vector<8x128xi32>
    %c16_i32 = arith.constant 16 : i32
    %21 = vector.broadcast %c16_i32 : i32 to vector<8x128xi32>
    %22 = arith.cmpi slt, %20, %21 : vector<8x128xi32>
    %cst_14 = arith.constant -1.000000e+30 : f32
    %23 = vector.broadcast %cst_14 : f32 to vector<8x128xf32>
    %24 = arith.select %22, %19, %23 : vector<8x128xi1>, vector<8x128xf32>
    %cst_15 = arith.constant dense<0xFF800000> : vector<8xf32>
    %25 = vector.multi_reduction <maximumf>, %24, %cst_15 [1] : vector<8x128xf32> to vector<8xf32>
    %26 = vector.shape_cast %25 : vector<8xf32> to vector<8x1xf32>
    %27 = vector.broadcast %26 : vector<8x1xf32> to vector<8x128xf32>
    %28 = arith.subf %24, %27 : vector<8x128xf32>
    %29 = math.exp %28 : vector<8x128xf32>
    %cst_16 = arith.constant dense<0.000000e+00> : vector<8xf32>
    %30 = vector.multi_reduction <add>, %29, %cst_16 [1] : vector<8x128xf32> to vector<8xf32>
    %31 = vector.shape_cast %30 : vector<8xf32> to vector<8x1xf32>
    %32 = vector.broadcast %31 : vector<8x1xf32> to vector<8x128xf32>
    %33 = arith.divf %29, %32 : vector<8x128xf32>
    %c0_17 = arith.constant 0 : index
    %c0_18 = arith.constant 0 : index
    %34 = vector.load %arg8[%c0_17, %c0_18] : memref<8x128xf32, #tpu.memory_space<vmem>>, vector<8x128xf32>
    tpu.vector_store %arg8[%c0_17, %c0_18], %33 {strides = array<i32>} : memref<8x128xf32, #tpu.memory_space<vmem>>, vector<8x128xf32>,
    %35 = vector.shape_cast %33 : vector<8x128xf32> to vector<8x128x1xf32>
    %36 = vector.broadcast %35 : vector<8x128x1xf32> to vector<8x128x32xf32>
    %37 = arith.mulf %36, %0 : vector<8x128x32xf32>
    %cst_19 = arith.constant dense<0.000000e+00> : vector<8x32xf32>
    %38 = vector.multi_reduction <add>, %37, %cst_19 [1] : vector<8x128x32xf32> to vector<8x32xf32>
    %c0_20 = arith.constant 0 : index
    %c0_21 = arith.constant 0 : index
    %39 = vector.load %arg7[%c0_20, %c0_21] : memref<8x32xf32, #tpu.memory_space<vmem>>, vector<8x32xf32>
    tpu.vector_store %arg7[%c0_20, %c0_21], %38 {strides = array<i32>} : memref<8x32xf32, #tpu.memory_space<vmem>>, vector<8x32xf32>,
    return
  }
  func.func @transform_0(%arg0: i32) -> (i32, i32, i32) {
    %c0_i32 = arith.constant 0 : i32
    %c0_i32_0 = arith.constant 0 : i32
    %c0_i32_1 = arith.constant 0 : i32
    return %arg0, %c0_i32, %c0_i32_0 : i32, i32, i32
  }
  func.func @transform_1(%arg0: i32) -> (i32, i32) {
    %c0_i32 = arith.constant 0 : i32
    %c0_i32_0 = arith.constant 0 : i32
    return %arg0, %c0_i32 : i32, i32
  }
  func.func @transform_2(%arg0: i32) -> (i32, i32) {
    %c0_i32 = arith.constant 0 : i32
    %c0_i32_0 = arith.constant 0 : i32
    %c0_i32_1 = arith.constant 0 : i32
    return %c0_i32, %c0_i32_0 : i32, i32
  }
  func.func @transform_3(%arg0: i32) -> (i32, i32) {
    %c0_i32 = arith.constant 0 : i32
    %c0_i32_0 = arith.constant 0 : i32
    %c0_i32_1 = arith.constant 0 : i32
    return %c0_i32, %c0_i32_0 : i32, i32
  }
  func.func @transform_4(%arg0: i32) -> (i32, i32) {
    %c0_i32 = arith.constant 0 : i32
    %c0_i32_0 = arith.constant 0 : i32
    %c0_i32_1 = arith.constant 0 : i32
    return %c0_i32, %c0_i32_0 : i32, i32
  }
  func.func @transform_5(%arg0: i32) -> (i32, i32) {
    %c0_i32 = arith.constant 0 : i32
    %c0_i32_0 = arith.constant 0 : i32
    %c0_i32_1 = arith.constant 0 : i32
    return %c0_i32, %c0_i32_0 : i32, i32
  }
  func.func @transform_6(%arg0: i32) -> (i32, i32) {
    %c0_i32 = arith.constant 0 : i32
    %c0_i32_0 = arith.constant 0 : i32
    return %arg0, %c0_i32 : i32, i32
  }
  func.func @transform_7(%arg0: i32) -> (i32, i32) {
    %c0_i32 = arith.constant 0 : i32
    %c0_i32_0 = arith.constant 0 : i32
    return %arg0, %c0_i32 : i32, i32
  }
}

</mosaic_0001>

<llo_original>
// kernel: tpu_custom_call.1
$region0: #{tpu_custom_call.1}
  #allocation0 [shape = 'u32[]', space=smem, size = 0x4, offset = 0x4, fixed_abs, tag = 'smem constant byte address 0x4 - core index']
  #allocation1 [shape = 'u32[72,128]{1,0:T(1,128)}', space=vmem, size = 0x9000, scoped, tag = 'internal scratch']
  %s0 = inlined_call_operand.vmem [shape: f32[8,128,32], index: 0, kind: input, shape index: {}]
  %s1 = inlined_call_operand.vmem [shape: f32[8,32], index: 1, kind: input, shape index: {}]
  %s2 = inlined_call_operand.vmem [shape: f32[32,32], index: 2, kind: input, shape index: {}]
  %s3 = inlined_call_operand.vmem [shape: f32[32,32], index: 3, kind: input, shape index: {}]
  %s4 = inlined_call_operand.vmem [shape: f32[1,32], index: 4, kind: input, shape index: {}]
  %s5 = inlined_call_operand.vmem [shape: f32[1,32], index: 5, kind: input, shape index: {}]
  %s6 = inlined_call_operand.hbm [shape: f32[8,32], index: 6, kind: output, shape index: {0}]
  %s7 = inlined_call_operand.hbm [shape: f32[8,128], index: 7, kind: output, shape index: {1}]
  %8 = xla_tuple %s6, %s7
  %s9 = sld [smem:[#allocation0]]
  $region42: #{tpu_custom_call.1} parent=0
    _
  %s11 = ssub.s32 1, %s9
  %s12 = scalar_select 0, %s11, %s9
  $region1: #{tpu_custom_call.1} parent=0
    #allocation2 [shape = 'u8[4096]{0}', space=vmem, size = 0x1000, scoped, tag = 'output window, operand 0, single buffered']
    #allocation3 [shape = 's32[1]{0}', space=sflag, size = 0x4, scoped, tag = 'scoped memory for tpu_custom_call.1']
    #allocation4 [shape = 'u8[4096]{0}', space=vmem, size = 0x1000, scoped, tag = 'output window, operand 1, single buffered']
    #allocation5 [shape = 's32[1]{0}', space=sflag, size = 0x4, scoped, tag = 'scoped memory for tpu_custom_call.1']
    %13 = vsyncpa [#allocation3], 0
    %14 = vsyncpa [#allocation5], 0
    // Predicated region
    $region2: #{tpu_custom_call.1} parent=1 // pred_check
      _
    $region3: #{tpu_custom_call.1} parent=1 // pred_check_branch
      %16 = sbr.rel (0) target = $region5
    $region4: #{tpu_custom_call.1} parent=1 // pred_region
      _
    $region5: #{tpu_custom_call.1} parent=1 // pred_fallthru
      _
    // Predicated region
    $region6: #{tpu_custom_call.1} parent=1 // pred_check
      _
    $region7: #{tpu_custom_call.1} parent=1 // pred_check_branch
      %18 = sbr.rel (0) target = $region9
    $region8: #{tpu_custom_call.1} parent=1 // pred_region
      _
    $region9: #{tpu_custom_call.1} parent=1 // pred_fallthru
      _
    // Predicated region
    $region10: #{tpu_custom_call.1} parent=1 // pred_check
      _
    $region11: #{tpu_custom_call.1} parent=1 // pred_check_branch
      %20 = sbr.rel (0) target = $region13
    $region12: #{tpu_custom_call.1} parent=1 // pred_region
      _
    $region13: #{tpu_custom_call.1} parent=1 // pred_fallthru
      _
    // Predicated region
    $region14: #{tpu_custom_call.1} parent=1 // pred_check
      _
    $region15: #{tpu_custom_call.1} parent=1 // pred_check_branch
      %22 = sbr.rel (0) target = $region17
    $region16: #{tpu_custom_call.1} parent=1 // pred_region
      _
    $region17: #{tpu_custom_call.1} parent=1 // pred_fallthru
      _
    // Predicated region
    $region18: #{tpu_custom_call.1} parent=1 // pred_check
      _
    $region19: #{tpu_custom_call.1} parent=1 // pred_check_branch
      %24 = sbr.rel (0) target = $region21
    $region20: #{tpu_custom_call.1} parent=1 // pred_region
      _
    $region21: #{tpu_custom_call.1} parent=1 // pred_fallthru
      _
    // Predicated region
    $region22: #{tpu_custom_call.1} parent=1 // pred_check
      _
    $region23: #{tpu_custom_call.1} parent=1 // pred_check_branch
      %26 = sbr.rel (0) target = $region25
    $region24: #{tpu_custom_call.1} parent=1 // pred_region
      _
    $region25: #{tpu_custom_call.1} parent=1 // pred_fallthru
      _
    %v27 = vld [vmem:[%s0] sm:$0xff]
    %v28 = vld [vmem:[%s0 + $0x8] sm:$0xff]
    %v29 = vld [vmem:[%s0 + $0x10] sm:$0xff]
    %v30 = vld [vmem:[%s0 + $0x18] sm:$0xff]
    %v31 = vld [vmem:[%s0 + $0x20] sm:$0xff]
    %v32 = vld [vmem:[%s0 + $0x28] sm:$0xff]
    %v33 = vld [vmem:[%s0 + $0x30] sm:$0xff]
    %v34 = vld [vmem:[%s0 + $0x38] sm:$0xff]
    %v35 = vld [vmem:[%s0 + $0x40] sm:$0xff]
    %v36 = vld [vmem:[%s0 + $0x48] sm:$0xff]
    %v37 = vld [vmem:[%s0 + $0x50] sm:$0xff]
    %v38 = vld [vmem:[%s0 + $0x58] sm:$0xff]
    %v39 = vld [vmem:[%s0 + $0x60] sm:$0xff]
    %v40 = vld [vmem:[%s0 + $0x68] sm:$0xff]
    %v41 = vld [vmem:[%s0 + $0x70] sm:$0xff]
    %v42 = vld [vmem:[%s0 + $0x78] sm:$0xff]
    %v43 = vld [vmem:[%s0 + $0x80] sm:$0xff]
    %v44 = vld [vmem:[%s0 + $0x88] sm:$0xff]
    %v45 = vld [vmem:[%s0 + $0x90] sm:$0xff]
    %v46 = vld [vmem:[%s0 + $0x98] sm:$0xff]
    %v47 = vld [vmem:[%s0 + $0xa0] sm:$0xff]
    %v48 = vld [vmem:[%s0 + $0xa8] sm:$0xff]
    %v49 = vld [vmem:[%s0 + $0xb0] sm:$0xff]
    %v50 = vld [vmem:[%s0 + $0xb8] sm:$0xff]
    %v51 = vld [vmem:[%s0 + $0xc0] sm:$0xff]
    %v52 = vld [vmem:[%s0 + $0xc8] sm:$0xff]
    %v53 = vld [vmem:[%s0 + $0xd0] sm:$0xff]
    %v54 = vld [vmem:[%s0 + $0xd8] sm:$0xff]
    %v55 = vld [vmem:[%s0 + $0xe0] sm:$0xff]
    %v56 = vld [vmem:[%s0 + $0xe8] sm:$0xff]
    %v57 = vld [vmem:[%s0 + $0xf0] sm:$0xff]
    %v58 = vld [vmem:[%s0 + $0xf8] sm:$0xff]
    %v59 = vld [vmem:[%s0 + $0x100] sm:$0xff]
    %v60 = vld [vmem:[%s0 + $0x108] sm:$0xff]
    %v61 = vld [vmem:[%s0 + $0x110] sm:$0xff]
    %v62 = vld [vmem:[%s0 + $0x118] sm:$0xff]
    %v63 = vld [vmem:[%s0 + $0x120] sm:$0xff]
    %v64 = vld [vmem:[%s0 + $0x128] sm:$0xff]
    %v65 = vld [vmem:[%s0 + $0x130] sm:$0xff]
    %v66 = vld [vmem:[%s0 + $0x138] sm:$0xff]
    %v67 = vld [vmem:[%s0 + $0x140] sm:$0xff]
    %v68 = vld [vmem:[%s0 + $0x148] sm:$0xff]
    %v69 = vld [vmem:[%s0 + $0x150] sm:$0xff]
    %v70 = vld [vmem:[%s0 + $0x158] sm:$0xff]
    %v71 = vld [vmem:[%s0 + $0x160] sm:$0xff]
    %v72 = vld [vmem:[%s0 + $0x168] sm:$0xff]
    %v73 = vld [vmem:[%s0 + $0x170] sm:$0xff]
    %v74 = vld [vmem:[%s0 + $0x178] sm:$0xff]
    %v75 = vld [vmem:[%s0 + $0x180] sm:$0xff]
    %v76 = vld [vmem:[%s0 + $0x188] sm:$0xff]
    %v77 = vld [vmem:[%s0 + $0x190] sm:$0xff]
    %v78 = vld [vmem:[%s0 + $0x198] sm:$0xff]
    %v79 = vld [vmem:[%s0 + $0x1a0] sm:$0xff]
    %v80 = vld [vmem:[%s0 + $0x1a8] sm:$0xff]
    %v81 = vld [vmem:[%s0 + $0x1b0] sm:$0xff]
    %v82 = vld [vmem:[%s0 + $0x1b8] sm:$0xff]
    %v83 = vld [vmem:[%s0 + $0x1c0] sm:$0xff]
    %v84 = vld [vmem:[%s0 + $0x1c8] sm:$0xff]
    %v85 = vld [vmem:[%s0 + $0x1d0] sm:$0xff]
    %v86 = vld [vmem:[%s0 + $0x1d8] sm:$0xff]
    %v87 = vld [vmem:[%s0 + $0x1e0] sm:$0xff]
    %v88 = vld [vmem:[%s0 + $0x1e8] sm:$0xff]
    %v89 = vld [vmem:[%s0 + $0x1f0] sm:$0xff]
    %v90 = vld [vmem:[%s0 + $0x1f8] sm:$0xff]
    %v91 = vld [vmem:[%s0 + $0x200] sm:$0xff]
    %v92 = vld [vmem:[%s0 + $0x208] sm:$0xff]
    %v93 = vld [vmem:[%s0 + $0x210] sm:$0xff]
    %v94 = vld [vmem:[%s0 + $0x218] sm:$0xff]
    %v95 = vld [vmem:[%s0 + $0x220] sm:$0xff]
    %v96 = vld [vmem:[%s0 + $0x228] sm:$0xff]
    %v97 = vld [vmem:[%s0 + $0x230] sm:$0xff]
    %v98 = vld [vmem:[%s0 + $0x238] sm:$0xff]
    %v99 = vld [vmem:[%s0 + $0x240] sm:$0xff]
    %v100 = vld [vmem:[%s0 + $0x248] sm:$0xff]
    %v101 = vld [vmem:[%s0 + $0x250] sm:$0xff]
    %v102 = vld [vmem:[%s0 + $0x258] sm:$0xff]
    %v103 = vld [vmem:[%s0 + $0x260] sm:$0xff]
    %v104 = vld [vmem:[%s0 + $0x268] sm:$0xff]
    %v105 = vld [vmem:[%s0 + $0x270] sm:$0xff]
    %v106 = vld [vmem:[%s0 + $0x278] sm:$0xff]
    %v107 = vld [vmem:[%s0 + $0x280] sm:$0xff]
    %v108 = vld [vmem:[%s0 + $0x288] sm:$0xff]
    %v109 = vld [vmem:[%s0 + $0x290] sm:$0xff]
    %v110 = vld [vmem:[%s0 + $0x298] sm:$0xff]
    %v111 = vld [vmem:[%s0 + $0x2a0] sm:$0xff]
    %v112 = vld [vmem:[%s0 + $0x2a8] sm:$0xff]
    %v113 = vld [vmem:[%s0 + $0x2b0] sm:$0xff]
    %v114 = vld [vmem:[%s0 + $0x2b8] sm:$0xff]
    %v115 = vld [vmem:[%s0 + $0x2c0] sm:$0xff]
    %v116 = vld [vmem:[%s0 + $0x2c8] sm:$0xff]
    %v117 = vld [vmem:[%s0 + $0x2d0] sm:$0xff]
    %v118 = vld [vmem:[%s0 + $0x2d8] sm:$0xff]
    %v119 = vld [vmem:[%s0 + $0x2e0] sm:$0xff]
    %v120 = vld [vmem:[%s0 + $0x2e8] sm:$0xff]
    %v121 = vld [vmem:[%s0 + $0x2f0] sm:$0xff]
    %v122 = vld [vmem:[%s0 + $0x2f8] sm:$0xff]
    %v123 = vld [vmem:[%s0 + $0x300] sm:$0xff]
    %v124 = vld [vmem:[%s0 + $0x308] sm:$0xff]
    %v125 = vld [vmem:[%s0 + $0x310] sm:$0xff]
    %v126 = vld [vmem:[%s0 + $0x318] sm:$0xff]
    %v127 = vld [vmem:[%s0 + $0x320] sm:$0xff]
    %v128 = vld [vmem:[%s0 + $0x328] sm:$0xff]
    %v129 = vld [vmem:[%s0 + $0x330] sm:$0xff]
    %v130 = vld [vmem:[%s0 + $0x338] sm:$0xff]
    %v131 = vld [vmem:[%s0 + $0x340] sm:$0xff]
    %v132 = vld [vmem:[%s0 + $0x348] sm:$0xff]
    %v133 = vld [vmem:[%s0 + $0x350] sm:$0xff]
    %v134 = vld [vmem:[%s0 + $0x358] sm:$0xff]
    %v135 = vld [vmem:[%s0 + $0x360] sm:$0xff]
    %v136 = vld [vmem:[%s0 + $0x368] sm:$0xff]
    %v137 = vld [vmem:[%s0 + $0x370] sm:$0xff]
    %v138 = vld [vmem:[%s0 + $0x378] sm:$0xff]
    %v139 = vld [vmem:[%s0 + $0x380] sm:$0xff]
    %v140 = vld [vmem:[%s0 + $0x388] sm:$0xff]
    %v141 = vld [vmem:[%s0 + $0x390] sm:$0xff]
    %v142 = vld [vmem:[%s0 + $0x398] sm:$0xff]
    %v143 = vld [vmem:[%s0 + $0x3a0] sm:$0xff]
    %v144 = vld [vmem:[%s0 + $0x3a8] sm:$0xff]
    %v145 = vld [vmem:[%s0 + $0x3b0] sm:$0xff]
    %v146 = vld [vmem:[%s0 + $0x3b8] sm:$0xff]
    %v147 = vld [vmem:[%s0 + $0x3c0] sm:$0xff]
    %v148 = vld [vmem:[%s0 + $0x3c8] sm:$0xff]
    %v149 = vld [vmem:[%s0 + $0x3d0] sm:$0xff]
    %v150 = vld [vmem:[%s0 + $0x3d8] sm:$0xff]
    %v151 = vld [vmem:[%s0 + $0x3e0] sm:$0xff]
    %v152 = vld [vmem:[%s0 + $0x3e8] sm:$0xff]
    %v153 = vld [vmem:[%s0 + $0x3f0] sm:$0xff]
    %v154 = vld [vmem:[%s0 + $0x3f8] sm:$0xff]
    %v155 = vld [vmem:[%s1] sm:$0xff]
    %v156 = vld [vmem:[%s2] sm:$0xff]
    %v157 = vld [vmem:[%s2 + $0x8] sm:$0xff]
    %v158 = vld [vmem:[%s2 + $0x10] sm:$0xff]
    %v159 = vld [vmem:[%s2 + $0x18] sm:$0xff]
    %vm160 = vcmask 261120
    %v162 = vsel %vm160, %v27, 0
    %v165 = vsel %vm160, %v28, 0
    %v168 = vsel %vm160, %v29, 0
    %v171 = vsel %vm160, %v30, 0
    %v174 = vsel %vm160, %v31, 0
    %v177 = vsel %vm160, %v32, 0
    %v180 = vsel %vm160, %v33, 0
    %v183 = vsel %vm160, %v34, 0
    %v186 = vsel %vm160, %v35, 0
    %v189 = vsel %vm160, %v36, 0
    %v192 = vsel %vm160, %v37, 0
    %v195 = vsel %vm160, %v38, 0
    %v198 = vsel %vm160, %v39, 0
    %v201 = vsel %vm160, %v40, 0
    %v204 = vsel %vm160, %v41, 0
    %v207 = vsel %vm160, %v42, 0
    %v210 = vsel %vm160, %v43, 0
    %v213 = vsel %vm160, %v44, 0
    %v216 = vsel %vm160, %v45, 0
    %v219 = vsel %vm160, %v46, 0
    %v222 = vsel %vm160, %v47, 0
    %v225 = vsel %vm160, %v48, 0
    %v228 = vsel %vm160, %v49, 0
    %v231 = vsel %vm160, %v50, 0
    %v234 = vsel %vm160, %v51, 0
    %v237 = vsel %vm160, %v52, 0
    %v240 = vsel %vm160, %v53, 0
    %v243 = vsel %vm160, %v54, 0
    %v246 = vsel %vm160, %v55, 0
    %v249 = vsel %vm160, %v56, 0
    %v252 = vsel %vm160, %v57, 0
    %v255 = vsel %vm160, %v58, 0
    %v258 = vsel %vm160, %v59, 0
    %v261 = vsel %vm160, %v60, 0
    %v264 = vsel %vm160, %v61, 0
    %v267 = vsel %vm160, %v62, 0
    %v270 = vsel %vm160, %v63, 0
    %v273 = vsel %vm160, %v64, 0
    %v276 = vsel %vm160, %v65, 0
    %v279 = vsel %vm160, %v66, 0
    %v282 = vsel %vm160, %v67, 0
    %v285 = vsel %vm160, %v68, 0
    %v288 = vsel %vm160, %v69, 0
    %v291 = vsel %vm160, %v70, 0
    %v294 = vsel %vm160, %v71, 0
    %v297 = vsel %vm160, %v72, 0
    %v300 = vsel %vm160, %v73, 0
    %v303 = vsel %vm160, %v74, 0
    %v306 = vsel %vm160, %v75, 0
    %v309 = vsel %vm160, %v76, 0
    %v312 = vsel %vm160, %v77, 0
    %v315 = vsel %vm160, %v78, 0
    %v318 = vsel %vm160, %v79, 0
    %v321 = vsel %vm160, %v80, 0
    %v324 = vsel %vm160, %v81, 0
    %v327 = vsel %vm160, %v82, 0
    %v330 = vsel %vm160, %v83, 0
    %v333 = vsel %vm160, %v84, 0
    %v336 = vsel %vm160, %v85, 0
    %v339 = vsel %vm160, %v86, 0
    %v342 = vsel %vm160, %v87, 0
    %v345 = vsel %vm160, %v88, 0
    %v348 = vsel %vm160, %v89, 0
    %v351 = vsel %vm160, %v90, 0
    %v354 = vsel %vm160, %v91, 0
    %v357 = vsel %vm160, %v92, 0
    %v360 = vsel %vm160, %v93, 0
    %v363 = vsel %vm160, %v94, 0
    %v366 = vsel %vm160, %v95, 0
    %v369 = vsel %vm160, %v96, 0
    %v372 = vsel %vm160, %v97, 0
    %v375 = vsel %vm160, %v98, 0
    %v378 = vsel %vm160, %v99, 0
    %v381 = vsel %vm160, %v100, 0
    %v384 = vsel %vm160, %v101, 0
    %v387 = vsel %vm160, %v102, 0
    %v390 = vsel %vm160, %v103, 0
    %v393 = vsel %vm160, %v104, 0
    %v396 = vsel %vm160, %v105, 0
    %v399 = vsel %vm160, %v106, 0
    %v402 = vsel %vm160, %v107, 0
    %v405 = vsel %vm160, %v108, 0
    %v408 = vsel %vm160, %v109, 0
    %v411 = vsel %vm160, %v110, 0
    %v414 = vsel %vm160, %v111, 0
    %v417 = vsel %vm160, %v112, 0
    %v420 = vsel %vm160, %v113, 0
    %v423 = vsel %vm160, %v114, 0
    %v426 = vsel %vm160, %v115, 0
    %v429 = vsel %vm160, %v116, 0
    %v432 = vsel %vm160, %v117, 0
    %v435 = vsel %vm160, %v118, 0
    %v438 = vsel %vm160, %v119, 0
    %v441 = vsel %vm160, %v120, 0
    %v444 = vsel %vm160, %v121, 0
    %v447 = vsel %vm160, %v122, 0
    %v450 = vsel %vm160, %v123, 0
    %v453 = vsel %vm160, %v124, 0
    %v456 = vsel %vm160, %v125, 0
    %v459 = vsel %vm160, %v126, 0
    %v462 = vsel %vm160, %v127, 0
    %v465 = vsel %vm160, %v128, 0
    %v468 = vsel %vm160, %v129, 0
    %v471 = vsel %vm160, %v130, 0
    %v474 = vsel %vm160, %v131, 0
    %v477 = vsel %vm160, %v132, 0
    %v480 = vsel %vm160, %v133, 0
    %v483 = vsel %vm160, %v134, 0
    %v486 = vsel %vm160, %v135, 0
    %v489 = vsel %vm160, %v136, 0
    %v492 = vsel %vm160, %v137, 0
    %v495 = vsel %vm160, %v138, 0
    %v498 = vsel %vm160, %v139, 0
    %v501 = vsel %vm160, %v140, 0
    %v504 = vsel %vm160, %v141, 0
    %v507 = vsel %vm160, %v142, 0
    %v510 = vsel %vm160, %v143, 0
    %v513 = vsel %vm160, %v144, 0
    %v516 = vsel %vm160, %v145, 0
    %v519 = vsel %vm160, %v146, 0
    %v522 = vsel %vm160, %v147, 0
    %v525 = vsel %vm160, %v148, 0
    %v528 = vsel %vm160, %v149, 0
    %v531 = vsel %vm160, %v150, 0
    %v534 = vsel %vm160, %v151, 0
    %v537 = vsel %vm160, %v152, 0
    %v540 = vsel %vm160, %v153, 0
    %v543 = vsel %vm160, %v154, 0
    %545 = vmatpush.msra.mxu0 0.0
    %546 = vmatpush.msra.mxu0 0.0
    %547 = vmatpush.msra.mxu0 0.0
    %548 = vmatpush.msra.mxu0 0.0
    %549 = vmatpush.msra.mxu0 0.0
    %550 = vmatpush.msra.mxu0 0.0
    %551 = vmatpush.msra.mxu0 0.0
    %552 = vmatpush.msra.mxu0 0.0
    %553 = vmatpush.msra.mxu0 0.0
    %554 = vmatpush.msra.mxu0 0.0
    %555 = vmatpush.msra.mxu0 0.0
    %556 = vmatpush.msra.mxu0 0.0
    %557 = vmatpush.msra.mxu0 %v159
    %558 = vmatpush.msra.mxu0 %v158
    %559 = vmatpush.msra.mxu0 %v157
    %560 = vmatpush.msra.mxu0 %v156
    %561 = vmatmul.f32.gmra.mxu0 %v162
    %v562 = vpop.f32.mrf.mxu0
    %v563 = vadd.f32 0.0, %v562
    %564 = vmatmul.f32.gmra.mxu0 %v165
    %v565 = vpop.f32.mrf.mxu0
    %v566 = vadd.f32 0.0, %v565
    %567 = vmatmul.f32.gmra.mxu0 %v168
    %v568 = vpop.f32.mrf.mxu0
    %v569 = vadd.f32 0.0, %v568
    %570 = vmatmul.f32.gmra.mxu0 %v171
    %v571 = vpop.f32.mrf.mxu0
    %v572 = vadd.f32 0.0, %v571
    %573 = vmatmul.f32.gmra.mxu0 %v174
    %v574 = vpop.f32.mrf.mxu0
    %v575 = vadd.f32 0.0, %v574
    %576 = vmatmul.f32.gmra.mxu0 %v177
    %v577 = vpop.f32.mrf.mxu0
    %v578 = vadd.f32 0.0, %v577
    %579 = vmatmul.f32.gmra.mxu0 %v180
    %v580 = vpop.f32.mrf.mxu0
    %v581 = vadd.f32 0.0, %v580
    %582 = vmatmul.f32.gmra.mxu0 %v183
    %v583 = vpop.f32.mrf.mxu0
    %v584 = vadd.f32 0.0, %v583
    %585 = vmatmul.f32.gmra.mxu0 %v186
    %v586 = vpop.f32.mrf.mxu0
    %v587 = vadd.f32 0.0, %v586
    %588 = vmatmul.f32.gmra.mxu0 %v189
    %v589 = vpop.f32.mrf.mxu0
    %v590 = vadd.f32 0.0, %v589
    %591 = vmatmul.f32.gmra.mxu0 %v192
    %v592 = vpop.f32.mrf.mxu0
    %v593 = vadd.f32 0.0, %v592
    %594 = vmatmul.f32.gmra.mxu0 %v195
    %v595 = vpop.f32.mrf.mxu0
    %v596 = vadd.f32 0.0, %v595
    %597 = vmatmul.f32.gmra.mxu0 %v198
    %v598 = vpop.f32.mrf.mxu0
    %v599 = vadd.f32 0.0, %v598
    %600 = vmatmul.f32.gmra.mxu0 %v201
    %v601 = vpop.f32.mrf.mxu0
    %v602 = vadd.f32 0.0, %v601
    %603 = vmatmul.f32.gmra.mxu0 %v204
    %v604 = vpop.f32.mrf.mxu0
    %v605 = vadd.f32 0.0, %v604
    %606 = vmatmul.f32.gmra.mxu0 %v207
    %v607 = vpop.f32.mrf.mxu0
    %v608 = vadd.f32 0.0, %v607
    %609 = vmatmul.f32.gmra.mxu0 %v210
    %v610 = vpop.f32.mrf.mxu0
    %v611 = vadd.f32 0.0, %v610
    %612 = vmatmul.f32.gmra.mxu0 %v213
    %v613 = vpop.f32.mrf.mxu0
    %v614 = vadd.f32 0.0, %v613
    %615 = vmatmul.f32.gmra.mxu0 %v216
    %v616 = vpop.f32.mrf.mxu0
    %v617 = vadd.f32 0.0, %v616
    %618 = vmatmul.f32.gmra.mxu0 %v219
    %v619 = vpop.f32.mrf.mxu0
    %v620 = vadd.f32 0.0, %v619
    %621 = vmatmul.f32.gmra.mxu0 %v222
    %v622 = vpop.f32.mrf.mxu0
    %v623 = vadd.f32 0.0, %v622
    %624 = vmatmul.f32.gmra.mxu0 %v225
    %v625 = vpop.f32.mrf.mxu0
    %v626 = vadd.f32 0.0, %v625
    %627 = vmatmul.f32.gmra.mxu0 %v228
    %v628 = vpop.f32.mrf.mxu0
    %v629 = vadd.f32 0.0, %v628
    %630 = vmatmul.f32.gmra.mxu0 %v231
    %v631 = vpop.f32.mrf.mxu0
    %v632 = vadd.f32 0.0, %v631
    %633 = vmatmul.f32.gmra.mxu0 %v234
    %v634 = vpop.f32.mrf.mxu0
    %v635 = vadd.f32 0.0, %v634
    %636 = vmatmul.f32.gmra.mxu0 %v237
    %v637 = vpop.f32.mrf.mxu0
    %v638 = vadd.f32 0.0, %v637
    %639 = vmatmul.f32.gmra.mxu0 %v240
    %v640 = vpop.f32.mrf.mxu0
    %v641 = vadd.f32 0.0, %v640
    %642 = vmatmul.f32.gmra.mxu0 %v243
    %v643 = vpop.f32.mrf.mxu0
    %v644 = vadd.f32 0.0, %v643
    %645 = vmatmul.f32.gmra.mxu0 %v246
    %v646 = vpop.f32.mrf.mxu0
    %v647 = vadd.f32 0.0, %v646
    %648 = vmatmul.f32.gmra.mxu0 %v249
    %v649 = vpop.f32.mrf.mxu0
    %v650 = vadd.f32 0.0, %v649
    %651 = vmatmul.f32.gmra.mxu0 %v252
    %v652 = vpop.f32.mrf.mxu0
    %v653 = vadd.f32 0.0, %v652
    %654 = vmatmul.f32.gmra.mxu0 %v255
    %v655 = vpop.f32.mrf.mxu0
    %v656 = vadd.f32 0.0, %v655
    %657 = vmatmul.f32.gmra.mxu0 %v258
    %v658 = vpop.f32.mrf.mxu0
    %v659 = vadd.f32 0.0, %v658
    %660 = vmatmul.f32.gmra.mxu0 %v261
    %v661 = vpop.f32.mrf.mxu0
    %v662 = vadd.f32 0.0, %v661
    %663 = vmatmul.f32.gmra.mxu0 %v264
    %v664 = vpop.f32.mrf.mxu0
    %v665 = vadd.f32 0.0, %v664
    %666 = vmatmul.f32.gmra.mxu0 %v267
    %v667 = vpop.f32.mrf.mxu0
    %v668 = vadd.f32 0.0, %v667
    %669 = vmatmul.f32.gmra.mxu0 %v270
    %v670 = vpop.f32.mrf.mxu0
    %v671 = vadd.f32 0.0, %v670
    %672 = vmatmul.f32.gmra.mxu0 %v273
    %v673 = vpop.f32.mrf.mxu0
    %v674 = vadd.f32 0.0, %v673
    %675 = vmatmul.f32.gmra.mxu0 %v276
    %v676 = vpop.f32.mrf.mxu0
    %v677 = vadd.f32 0.0, %v676
    %678 = vmatmul.f32.gmra.mxu0 %v279
    %v679 = vpop.f32.mrf.mxu0
    %v680 = vadd.f32 0.0, %v679
    %681 = vmatmul.f32.gmra.mxu0 %v282
    %v682 = vpop.f32.mrf.mxu0
    %v683 = vadd.f32 0.0, %v682
    %684 = vmatmul.f32.gmra.mxu0 %v285
    %v685 = vpop.f32.mrf.mxu0
    %v686 = vadd.f32 0.0, %v685
    %687 = vmatmul.f32.gmra.mxu0 %v288
    %v688 = vpop.f32.mrf.mxu0
    %v689 = vadd.f32 0.0, %v688
    %690 = vmatmul.f32.gmra.mxu0 %v291
    %v691 = vpop.f32.mrf.mxu0
    %v692 = vadd.f32 0.0, %v691
    %693 = vmatmul.f32.gmra.mxu0 %v294
    %v694 = vpop.f32.mrf.mxu0
    %v695 = vadd.f32 0.0, %v694
    %696 = vmatmul.f32.gmra.mxu0 %v297
    %v697 = vpop.f32.mrf.mxu0
    %v698 = vadd.f32 0.0, %v697
    %699 = vmatmul.f32.gmra.mxu0 %v300
    %v700 = vpop.f32.mrf.mxu0
    %v701 = vadd.f32 0.0, %v700
    %702 = vmatmul.f32.gmra.mxu0 %v303
    %v703 = vpop.f32.mrf.mxu0
    %v704 = vadd.f32 0.0, %v703
    %705 = vmatmul.f32.gmra.mxu0 %v306
    %v706 = vpop.f32.mrf.mxu0
    %v707 = vadd.f32 0.0, %v706
    %708 = vmatmul.f32.gmra.mxu0 %v309
    %v709 = vpop.f32.mrf.mxu0
    %v710 = vadd.f32 0.0, %v709
    %711 = vmatmul.f32.gmra.mxu0 %v312
    %v712 = vpop.f32.mrf.mxu0
    %v713 = vadd.f32 0.0, %v712
    %714 = vmatmul.f32.gmra.mxu0 %v315
    %v715 = vpop.f32.mrf.mxu0
    %v716 = vadd.f32 0.0, %v715
    %717 = vmatmul.f32.gmra.mxu0 %v318
    %v718 = vpop.f32.mrf.mxu0
    %v719 = vadd.f32 0.0, %v718
    %720 = vmatmul.f32.gmra.mxu0 %v321
    %v721 = vpop.f32.mrf.mxu0
    %v722 = vadd.f32 0.0, %v721
    %723 = vmatmul.f32.gmra.mxu0 %v324
    %v724 = vpop.f32.mrf.mxu0
    %v725 = vadd.f32 0.0, %v724
    %726 = vmatmul.f32.gmra.mxu0 %v327
    %v727 = vpop.f32.mrf.mxu0
    %v728 = vadd.f32 0.0, %v727
    %729 = vmatmul.f32.gmra.mxu0 %v330
    %v730 = vpop.f32.mrf.mxu0
    %v731 = vadd.f32 0.0, %v730
    %732 = vmatmul.f32.gmra.mxu0 %v333
    %v733 = vpop.f32.mrf.mxu0
    %v734 = vadd.f32 0.0, %v733
    %735 = vmatmul.f32.gmra.mxu0 %v336
    %v736 = vpop.f32.mrf.mxu0
    %v737 = vadd.f32 0.0, %v736
    %738 = vmatmul.f32.gmra.mxu0 %v339
    %v739 = vpop.f32.mrf.mxu0
    %v740 = vadd.f32 0.0, %v739
    %741 = vmatmul.f32.gmra.mxu0 %v342
    %v742 = vpop.f32.mrf.mxu0
    %v743 = vadd.f32 0.0, %v742
    %744 = vmatmul.f32.gmra.mxu0 %v345
    %v745 = vpop.f32.mrf.mxu0
    %v746 = vadd.f32 0.0, %v745
    %747 = vmatmul.f32.gmra.mxu0 %v348
    %v748 = vpop.f32.mrf.mxu0
    %v749 = vadd.f32 0.0, %v748
    %750 = vmatmul.f32.gmra.mxu0 %v351
    %v751 = vpop.f32.mrf.mxu0
    %v752 = vadd.f32 0.0, %v751
    %753 = vmatmul.f32.gmra.mxu0 %v354
    %v754 = vpop.f32.mrf.mxu0
    %v755 = vadd.f32 0.0, %v754
    %756 = vmatmul.f32.gmra.mxu0 %v357
    %v757 = vpop.f32.mrf.mxu0
    %v758 = vadd.f32 0.0, %v757
    %759 = vmatmul.f32.gmra.mxu0 %v360
    %v760 = vpop.f32.mrf.mxu0
    %v761 = vadd.f32 0.0, %v760
    %762 = vmatmul.f32.gmra.mxu0 %v363
    %v763 = vpop.f32.mrf.mxu0
    %v764 = vadd.f32 0.0, %v763
    %765 = vmatmul.f32.gmra.mxu0 %v366
    %v766 = vpop.f32.mrf.mxu0
    %v767 = vadd.f32 0.0, %v766
    %768 = vmatmul.f32.gmra.mxu0 %v369
    %v769 = vpop.f32.mrf.mxu0
    %v770 = vadd.f32 0.0, %v769
    %771 = vmatmul.f32.gmra.mxu0 %v372
    %v772 = vpop.f32.mrf.mxu0
    %v773 = vadd.f32 0.0, %v772
    %774 = vmatmul.f32.gmra.mxu0 %v375
    %v775 = vpop.f32.mrf.mxu0
    %v776 = vadd.f32 0.0, %v775
    %777 = vmatmul.f32.gmra.mxu0 %v378
    %v778 = vpop.f32.mrf.mxu0
    %v779 = vadd.f32 0.0, %v778
    %780 = vmatmul.f32.gmra.mxu0 %v381
    %v781 = vpop.f32.mrf.mxu0
    %v782 = vadd.f32 0.0, %v781
    %783 = vmatmul.f32.gmra.mxu0 %v384
    %v784 = vpop.f32.mrf.mxu0
    %v785 = vadd.f32 0.0, %v784
    %786 = vmatmul.f32.gmra.mxu0 %v387
    %v787 = vpop.f32.mrf.mxu0
    %v788 = vadd.f32 0.0, %v787
    %789 = vmatmul.f32.gmra.mxu0 %v390
    %v790 = vpop.f32.mrf.mxu0
    %v791 = vadd.f32 0.0, %v790
    %792 = vmatmul.f32.gmra.mxu0 %v393
    %v793 = vpop.f32.mrf.mxu0
    %v794 = vadd.f32 0.0, %v793
    %795 = vmatmul.f32.gmra.mxu0 %v396
    %v796 = vpop.f32.mrf.mxu0
    %v797 = vadd.f32 0.0, %v796
    %798 = vmatmul.f32.gmra.mxu0 %v399
    %v799 = vpop.f32.mrf.mxu0
    %v800 = vadd.f32 0.0, %v799
    %801 = vmatmul.f32.gmra.mxu0 %v402
    %v802 = vpop.f32.mrf.mxu0
    %v803 = vadd.f32 0.0, %v802
    %804 = vmatmul.f32.gmra.mxu0 %v405
    %v805 = vpop.f32.mrf.mxu0
    %v806 = vadd.f32 0.0, %v805
    %807 = vmatmul.f32.gmra.mxu0 %v408
    %v808 = vpop.f32.mrf.mxu0
    %v809 = vadd.f32 0.0, %v808
    %810 = vmatmul.f32.gmra.mxu0 %v411
    %v811 = vpop.f32.mrf.mxu0
    %v812 = vadd.f32 0.0, %v811
    %813 = vmatmul.f32.gmra.mxu0 %v414
    %v814 = vpop.f32.mrf.mxu0
    %v815 = vadd.f32 0.0, %v814
    %816 = vmatmul.f32.gmra.mxu0 %v417
    %v817 = vpop.f32.mrf.mxu0
    %v818 = vadd.f32 0.0, %v817
    %819 = vmatmul.f32.gmra.mxu0 %v420
    %v820 = vpop.f32.mrf.mxu0
    %v821 = vadd.f32 0.0, %v820
    %822 = vmatmul.f32.gmra.mxu0 %v423
    %v823 = vpop.f32.mrf.mxu0
    %v824 = vadd.f32 0.0, %v823
    %825 = vmatmul.f32.gmra.mxu0 %v426
    %v826 = vpop.f32.mrf.mxu0
    %v827 = vadd.f32 0.0, %v826
    %828 = vmatmul.f32.gmra.mxu0 %v429
    %v829 = vpop.f32.mrf.mxu0
    %v830 = vadd.f32 0.0, %v829
    %831 = vmatmul.f32.gmra.mxu0 %v432
    %v832 = vpop.f32.mrf.mxu0
    %v833 = vadd.f32 0.0, %v832
    %834 = vmatmul.f32.gmra.mxu0 %v435
    %v835 = vpop.f32.mrf.mxu0
    %v836 = vadd.f32 0.0, %v835
    %837 = vmatmul.f32.gmra.mxu0 %v438
    %v838 = vpop.f32.mrf.mxu0
    %v839 = vadd.f32 0.0, %v838
    %840 = vmatmul.f32.gmra.mxu0 %v441
    %v841 = vpop.f32.mrf.mxu0
    %v842 = vadd.f32 0.0, %v841
    %843 = vmatmul.f32.gmra.mxu0 %v444
    %v844 = vpop.f32.mrf.mxu0
    %v845 = vadd.f32 0.0, %v844
    %846 = vmatmul.f32.gmra.mxu0 %v447
    %v847 = vpop.f32.mrf.mxu0
    %v848 = vadd.f32 0.0, %v847
    %849 = vmatmul.f32.gmra.mxu0 %v450
    %v850 = vpop.f32.mrf.mxu0
    %v851 = vadd.f32 0.0, %v850
    %852 = vmatmul.f32.gmra.mxu0 %v453
    %v853 = vpop.f32.mrf.mxu0
    %v854 = vadd.f32 0.0, %v853
    %855 = vmatmul.f32.gmra.mxu0 %v456
    %v856 = vpop.f32.mrf.mxu0
    %v857 = vadd.f32 0.0, %v856
    %858 = vmatmul.f32.gmra.mxu0 %v459
    %v859 = vpop.f32.mrf.mxu0
    %v860 = vadd.f32 0.0, %v859
    %861 = vmatmul.f32.gmra.mxu0 %v462
    %v862 = vpop.f32.mrf.mxu0
    %v863 = vadd.f32 0.0, %v862
    %864 = vmatmul.f32.gmra.mxu0 %v465
    %v865 = vpop.f32.mrf.mxu0
    %v866 = vadd.f32 0.0, %v865
    %867 = vmatmul.f32.gmra.mxu0 %v468
    %v868 = vpop.f32.mrf.mxu0
    %v869 = vadd.f32 0.0, %v868
    %870 = vmatmul.f32.gmra.mxu0 %v471
    %v871 = vpop.f32.mrf.mxu0
    %v872 = vadd.f32 0.0, %v871
    %873 = vmatmul.f32.gmra.mxu0 %v474
    %v874 = vpop.f32.mrf.mxu0
    %v875 = vadd.f32 0.0, %v874
    %876 = vmatmul.f32.gmra.mxu0 %v477
    %v877 = vpop.f32.mrf.mxu0
    %v878 = vadd.f32 0.0, %v877
    %879 = vmatmul.f32.gmra.mxu0 %v480
    %v880 = vpop.f32.mrf.mxu0
    %v881 = vadd.f32 0.0, %v880
    %882 = vmatmul.f32.gmra.mxu0 %v483
    %v883 = vpop.f32.mrf.mxu0
    %v884 = vadd.f32 0.0, %v883
    %885 = vmatmul.f32.gmra.mxu0 %v486
    %v886 = vpop.f32.mrf.mxu0
    %v887 = vadd.f32 0.0, %v886
    %888 = vmatmul.f32.gmra.mxu0 %v489
    %v889 = vpop.f32.mrf.mxu0
    %v890 = vadd.f32 0.0, %v889
    %891 = vmatmul.f32.gmra.mxu0 %v492
    %v892 = vpop.f32.mrf.mxu0
    %v893 = vadd.f32 0.0, %v892
    %894 = vmatmul.f32.gmra.mxu0 %v495
    %v895 = vpop.f32.mrf.mxu0
    %v896 = vadd.f32 0.0, %v895
    %897 = vmatmul.f32.gmra.mxu0 %v498
    %v898 = vpop.f32.mrf.mxu0
    %v899 = vadd.f32 0.0, %v898
    %900 = vmatmul.f32.gmra.mxu0 %v501
    %v901 = vpop.f32.mrf.mxu0
    %v902 = vadd.f32 0.0, %v901
    %903 = vmatmul.f32.gmra.mxu0 %v504
    %v904 = vpop.f32.mrf.mxu0
    %v905 = vadd.f32 0.0, %v904
    %906 = vmatmul.f32.gmra.mxu0 %v507
    %v907 = vpop.f32.mrf.mxu0
    %v908 = vadd.f32 0.0, %v907
    %909 = vmatmul.f32.gmra.mxu0 %v510
    %v910 = vpop.f32.mrf.mxu0
    %v911 = vadd.f32 0.0, %v910
    %912 = vmatmul.f32.gmra.mxu0 %v513
    %v913 = vpop.f32.mrf.mxu0
    %v914 = vadd.f32 0.0, %v913
    %915 = vmatmul.f32.gmra.mxu0 %v516
    %v916 = vpop.f32.mrf.mxu0
    %v917 = vadd.f32 0.0, %v916
    %918 = vmatmul.f32.gmra.mxu0 %v519
    %v919 = vpop.f32.mrf.mxu0
    %v920 = vadd.f32 0.0, %v919
    %921 = vmatmul.f32.gmra.mxu0 %v522
    %v922 = vpop.f32.mrf.mxu0
    %v923 = vadd.f32 0.0, %v922
    %924 = vmatmul.f32.gmra.mxu0 %v525
    %v925 = vpop.f32.mrf.mxu0
    %v926 = vadd.f32 0.0, %v925
    %927 = vmatmul.f32.gmra.mxu0 %v528
    %v928 = vpop.f32.mrf.mxu0
    %v929 = vadd.f32 0.0, %v928
    %930 = vmatmul.f32.gmra.mxu0 %v531
    %v931 = vpop.f32.mrf.mxu0
    %v932 = vadd.f32 0.0, %v931
    %933 = vmatmul.f32.gmra.mxu0 %v534
    %v934 = vpop.f32.mrf.mxu0
    %v935 = vadd.f32 0.0, %v934
    %936 = vmatmul.f32.gmra.mxu0 %v537
    %v937 = vpop.f32.mrf.mxu0
    %v938 = vadd.f32 0.0, %v937
    %939 = vmatmul.f32.gmra.mxu0 %v540
    %v940 = vpop.f32.mrf.mxu0
    %v941 = vadd.f32 0.0, %v940
    %942 = vmatmul.f32.gmra.mxu0 %v543
    %v943 = vpop.f32.mrf.mxu0
    %v944 = vadd.f32 0.0, %v943
    %945 = vdwg.mxu0
    %v946 = vld [vmem:[%s3] sm:$0xff]
    %v947 = vld [vmem:[%s3 + $0x8] sm:$0xff]
    %v948 = vld [vmem:[%s3 + $0x10] sm:$0xff]
    %v949 = vld [vmem:[%s3 + $0x18] sm:$0xff]
    %v950 = vld [vmem:[%s4] sm:$0x1]
    %v952 = vperm.slane %v950, 0
    %v955 = vsel %vm160, %v155, 0
    %957 = vmatpush.msra.mxu0 0.0
    %958 = vmatpush.msra.mxu0 0.0
    %959 = vmatpush.msra.mxu0 0.0
    %960 = vmatpush.msra.mxu0 0.0
    %961 = vmatpush.msra.mxu0 0.0
    %962 = vmatpush.msra.mxu0 0.0
    %963 = vmatpush.msra.mxu0 0.0
    %964 = vmatpush.msra.mxu0 0.0
    %965 = vmatpush.msra.mxu0 0.0
    %966 = vmatpush.msra.mxu0 0.0
    %967 = vmatpush.msra.mxu0 0.0
    %968 = vmatpush.msra.mxu0 0.0
    %969 = vmatpush.msra.mxu0 %v949
    %970 = vmatpush.msra.mxu0 %v948
    %971 = vmatpush.msra.mxu0 %v947
    %972 = vmatpush.msra.mxu0 %v946
    %973 = vmatmul.f32.gmra.mxu0 %v955
    %v974 = vpop.f32.mrf.mxu0
    %v975 = vadd.f32 %v952, %v974
    %976 = vdwg.mxu0
    %v978 = vrot.slane %v975, 1
    %v979 = vrot.slane %v975, 2
    %v980 = vrot.slane %v975, 3
    %v981 = vrot.slane %v975, 4
    %v982 = vrot.slane %v975, 5
    %v983 = vrot.slane %v975, 6
    %v984 = vrot.slane %v975, 7
    %v985 = vperm.slane %v975, 0
    %v986 = vperm.slane %v978, 0
    %v987 = vperm.slane %v979, 0
    %v988 = vperm.slane %v980, 0
    %v989 = vperm.slane %v981, 0
    %v990 = vperm.slane %v982, 0
    %v991 = vperm.slane %v983, 0
    %v992 = vperm.slane %v984, 0
    %v1001 = vadd.f32 %v563, %v985
    %v1002 = vadd.f32 %v566, %v985
    %v1003 = vadd.f32 %v569, %v985
    %v1004 = vadd.f32 %v572, %v985
    %v1005 = vadd.f32 %v575, %v985
    %v1006 = vadd.f32 %v578, %v985
    %v1007 = vadd.f32 %v581, %v985
    %v1008 = vadd.f32 %v584, %v985
    %v1009 = vadd.f32 %v587, %v985
    %v1010 = vadd.f32 %v590, %v985
    %v1011 = vadd.f32 %v593, %v985
    %v1012 = vadd.f32 %v596, %v985
    %v1013 = vadd.f32 %v599, %v985
    %v1014 = vadd.f32 %v602, %v985
    %v1015 = vadd.f32 %v605, %v985
    %v1016 = vadd.f32 %v608, %v985
    %v1017 = vadd.f32 %v611, %v986
    %v1018 = vadd.f32 %v614, %v986
    %v1019 = vadd.f32 %v617, %v986
    %v1020 = vadd.f32 %v620, %v986
    %v1021 = vadd.f32 %v623, %v986
    %v1022 = vadd.f32 %v626, %v986
    %v1023 = vadd.f32 %v629, %v986
    %v1024 = vadd.f32 %v632, %v986
    %v1025 = vadd.f32 %v635, %v986
    %v1026 = vadd.f32 %v638, %v986
    %v1027 = vadd.f32 %v641, %v986
    %v1028 = vadd.f32 %v644, %v986
    %v1029 = vadd.f32 %v647, %v986
    %v1030 = vadd.f32 %v650, %v986
    %v1031 = vadd.f32 %v653, %v986
    %v1032 = vadd.f32 %v656, %v986
    %v1033 = vadd.f32 %v659, %v987
    %v1034 = vadd.f32 %v662, %v987
    %v1035 = vadd.f32 %v665, %v987
    %v1036 = vadd.f32 %v668, %v987
    %v1037 = vadd.f32 %v671, %v987
    %v1038 = vadd.f32 %v674, %v987
    %v1039 = vadd.f32 %v677, %v987
    %v1040 = vadd.f32 %v680, %v987
    %v1041 = vadd.f32 %v683, %v987
    %v1042 = vadd.f32 %v686, %v987
    %v1043 = vadd.f32 %v689, %v987
    %v1044 = vadd.f32 %v692, %v987
    %v1045 = vadd.f32 %v695, %v987
    %v1046 = vadd.f32 %v698, %v987
    %v1047 = vadd.f32 %v701, %v987
    %v1048 = vadd.f32 %v704, %v987
    %v1049 = vadd.f32 %v707, %v988
    %v1050 = vadd.f32 %v710, %v988
    %v1051 = vadd.f32 %v713, %v988
    %v1052 = vadd.f32 %v716, %v988
    %v1053 = vadd.f32 %v719, %v988
    %v1054 = vadd.f32 %v722, %v988
    %v1055 = vadd.f32 %v725, %v988
    %v1056 = vadd.f32 %v728, %v988
    %v1057 = vadd.f32 %v731, %v988
    %v1058 = vadd.f32 %v734, %v988
    %v1059 = vadd.f32 %v737, %v988
    %v1060 = vadd.f32 %v740, %v988
    %v1061 = vadd.f32 %v743, %v988
    %v1062 = vadd.f32 %v746, %v988
    %v1063 = vadd.f32 %v749, %v988
    %v1064 = vadd.f32 %v752, %v988
    %v1065 = vadd.f32 %v755, %v989
    %v1066 = vadd.f32 %v758, %v989
    %v1067 = vadd.f32 %v761, %v989
    %v1068 = vadd.f32 %v764, %v989
    %v1069 = vadd.f32 %v767, %v989
    %v1070 = vadd.f32 %v770, %v989
    %v1071 = vadd.f32 %v773, %v989
    %v1072 = vadd.f32 %v776, %v989
    %v1073 = vadd.f32 %v779, %v989
    %v1074 = vadd.f32 %v782, %v989
    %v1075 = vadd.f32 %v785, %v989
    %v1076 = vadd.f32 %v788, %v989
    %v1077 = vadd.f32 %v791, %v989
    %v1078 = vadd.f32 %v794, %v989
    %v1079 = vadd.f32 %v797, %v989
    %v1080 = vadd.f32 %v800, %v989
    %v1081 = vadd.f32 %v803, %v990
    %v1082 = vadd.f32 %v806, %v990
    %v1083 = vadd.f32 %v809, %v990
    %v1084 = vadd.f32 %v812, %v990
    %v1085 = vadd.f32 %v815, %v990
    %v1086 = vadd.f32 %v818, %v990
    %v1087 = vadd.f32 %v821, %v990
    %v1088 = vadd.f32 %v824, %v990
    %v1089 = vadd.f32 %v827, %v990
    %v1090 = vadd.f32 %v830, %v990
    %v1091 = vadd.f32 %v833, %v990
    %v1092 = vadd.f32 %v836, %v990
    %v1093 = vadd.f32 %v839, %v990
    %v1094 = vadd.f32 %v842, %v990
    %v1095 = vadd.f32 %v845, %v990
    %v1096 = vadd.f32 %v848, %v990
    %v1097 = vadd.f32 %v851, %v991
    %v1098 = vadd.f32 %v854, %v991
    %v1099 = vadd.f32 %v857, %v991
    %v1100 = vadd.f32 %v860, %v991
    %v1101 = vadd.f32 %v863, %v991
    %v1102 = vadd.f32 %v866, %v991
    %v1103 = vadd.f32 %v869, %v991
    %v1104 = vadd.f32 %v872, %v991
    %v1105 = vadd.f32 %v875, %v991
    %v1106 = vadd.f32 %v878, %v991
    %v1107 = vadd.f32 %v881, %v991
    %v1108 = vadd.f32 %v884, %v991
    %v1109 = vadd.f32 %v887, %v991
    %v1110 = vadd.f32 %v890, %v991
    %v1111 = vadd.f32 %v893, %v991
    %v1112 = vadd.f32 %v896, %v991
    %v1113 = vadd.f32 %v899, %v992
    %v1114 = vadd.f32 %v902, %v992
    %v1115 = vadd.f32 %v905, %v992
    %v1116 = vadd.f32 %v908, %v992
    %v1117 = vadd.f32 %v911, %v992
    %v1118 = vadd.f32 %v914, %v992
    %v1119 = vadd.f32 %v917, %v992
    %v1120 = vadd.f32 %v920, %v992
    %v1121 = vadd.f32 %v923, %v992
    %v1122 = vadd.f32 %v926, %v992
    %v1123 = vadd.f32 %v929, %v992
    %v1124 = vadd.f32 %v932, %v992
    %v1125 = vadd.f32 %v935, %v992
    %v1126 = vadd.f32 %v938, %v992
    %v1127 = vadd.f32 %v941, %v992
    %v1128 = vadd.f32 %v944, %v992
    %v1129 = vtanh.pop %v1001
    %v1130 = vtanh.pop %v1002
    %v1131 = vtanh.pop %v1003
    %v1132 = vtanh.pop %v1004
    %v1133 = vtanh.pop %v1005
    %v1134 = vtanh.pop %v1006
    %v1135 = vtanh.pop %v1007
    %v1136 = vtanh.pop %v1008
    %v1137 = vtanh.pop %v1009
    %v1138 = vtanh.pop %v1010
    %v1139 = vtanh.pop %v1011
    %v1140 = vtanh.pop %v1012
    %v1141 = vtanh.pop %v1013
    %v1142 = vtanh.pop %v1014
    %v1143 = vtanh.pop %v1015
    %v1144 = vtanh.pop %v1016
    %v1145 = vtanh.pop %v1017
    %v1146 = vtanh.pop %v1018
    %v1147 = vtanh.pop %v1019
    %v1148 = vtanh.pop %v1020
    %v1149 = vtanh.pop %v1021
    %v1150 = vtanh.pop %v1022
    %v1151 = vtanh.pop %v1023
    %v1152 = vtanh.pop %v1024
    %v1153 = vtanh.pop %v1025
    %v1154 = vtanh.pop %v1026
    %v1155 = vtanh.pop %v1027
    %v1156 = vtanh.pop %v1028
    %v1157 = vtanh.pop %v1029
    %v1158 = vtanh.pop %v1030
    %v1159 = vtanh.pop %v1031
    %v1160 = vtanh.pop %v1032
    %v1161 = vtanh.pop %v1033
    %v1162 = vtanh.pop %v1034
    %v1163 = vtanh.pop %v1035
    %v1164 = vtanh.pop %v1036
    %v1165 = vtanh.pop %v1037
    %v1166 = vtanh.pop %v1038
    %v1167 = vtanh.pop %v1039
    %v1168 = vtanh.pop %v1040
    %v1169 = vtanh.pop %v1041
    %v1170 = vtanh.pop %v1042
    %v1171 = vtanh.pop %v1043
    %v1172 = vtanh.pop %v1044
    %v1173 = vtanh.pop %v1045
    %v1174 = vtanh.pop %v1046
    %v1175 = vtanh.pop %v1047
    %v1176 = vtanh.pop %v1048
    %v1177 = vtanh.pop %v1049
    %v1178 = vtanh.pop %v1050
    %v1179 = vtanh.pop %v1051
    %v1180 = vtanh.pop %v1052
    %v1181 = vtanh.pop %v1053
    %v1182 = vtanh.pop %v1054
    %v1183 = vtanh.pop %v1055
    %v1184 = vtanh.pop %v1056
    %v1185 = vtanh.pop %v1057
    %v1186 = vtanh.pop %v1058
    %v1187 = vtanh.pop %v1059
    %v1188 = vtanh.pop %v1060
    %v1189 = vtanh.pop %v1061
    %v1190 = vtanh.pop %v1062
    %v1191 = vtanh.pop %v1063
    %v1192 = vtanh.pop %v1064
    %v1193 = vtanh.pop %v1065
    %v1194 = vtanh.pop %v1066
    %v1195 = vtanh.pop %v1067
    %v1196 = vtanh.pop %v1068
    %v1197 = vtanh.pop %v1069
    %v1198 = vtanh.pop %v1070
    %v1199 = vtanh.pop %v1071
    %v1200 = vtanh.pop %v1072
    %v1201 = vtanh.pop %v1073
    %v1202 = vtanh.pop %v1074
    %v1203 = vtanh.pop %v1075
    %v1204 = vtanh.pop %v1076
    %v1205 = vtanh.pop %v1077
    %v1206 = vtanh.pop %v1078
    %v1207 = vtanh.pop %v1079
    %v1208 = vtanh.pop %v1080
    %v1209 = vtanh.pop %v1081
    %v1210 = vtanh.pop %v1082
    %v1211 = vtanh.pop %v1083
    %v1212 = vtanh.pop %v1084
    %v1213 = vtanh.pop %v1085
    %v1214 = vtanh.pop %v1086
    %v1215 = vtanh.pop %v1087
    %v1216 = vtanh.pop %v1088
    %v1217 = vtanh.pop %v1089
    %v1218 = vtanh.pop %v1090
    %v1219 = vtanh.pop %v1091
    %v1220 = vtanh.pop %v1092
    %v1221 = vtanh.pop %v1093
    %v1222 = vtanh.pop %v1094
    %v1223 = vtanh.pop %v1095
    %v1224 = vtanh.pop %v1096
    %v1225 = vtanh.pop %v1097
    %v1226 = vtanh.pop %v1098
    %v1227 = vtanh.pop %v1099
    %v1228 = vtanh.pop %v1100
    %v1229 = vtanh.pop %v1101
    %v1230 = vtanh.pop %v1102
    %v1231 = vtanh.pop %v1103
    %v1232 = vtanh.pop %v1104
    %v1233 = vtanh.pop %v1105
    %v1234 = vtanh.pop %v1106
    %v1235 = vtanh.pop %v1107
    %v1236 = vtanh.pop %v1108
    %v1237 = vtanh.pop %v1109
    %v1238 = vtanh.pop %v1110
    %v1239 = vtanh.pop %v1111
    %v1240 = vtanh.pop %v1112
    %v1241 = vtanh.pop %v1113
    %v1242 = vtanh.pop %v1114
    %v1243 = vtanh.pop %v1115
    %v1244 = vtanh.pop %v1116
    %v1245 = vtanh.pop %v1117
    %v1246 = vtanh.pop %v1118
    %v1247 = vtanh.pop %v1119
    %v1248 = vtanh.pop %v1120
    %v1249 = vtanh.pop %v1121
    %v1250 = vtanh.pop %v1122
    %v1251 = vtanh.pop %v1123
    %v1252 = vtanh.pop %v1124
    %v1253 = vtanh.pop %v1125
    %v1254 = vtanh.pop %v1126
    %v1255 = vtanh.pop %v1127
    %v1256 = vtanh.pop %v1128
    %v1257 = vld [vmem:[%s5] sm:$0x1]
    %v1259 = vperm.slane %v1257, 0
    %v1261 = vmul.f32 %v1129, %v1259
    %v1262 = vmul.f32 %v1130, %v1259
    %v1263 = vmul.f32 %v1131, %v1259
    %v1264 = vmul.f32 %v1132, %v1259
    %v1265 = vmul.f32 %v1133, %v1259
    %v1266 = vmul.f32 %v1134, %v1259
    %v1267 = vmul.f32 %v1135, %v1259
    %v1268 = vmul.f32 %v1136, %v1259
    %v1269 = vmul.f32 %v1137, %v1259
    %v1270 = vmul.f32 %v1138, %v1259
    %v1271 = vmul.f32 %v1139, %v1259
    %v1272 = vmul.f32 %v1140, %v1259
    %v1273 = vmul.f32 %v1141, %v1259
    %v1274 = vmul.f32 %v1142, %v1259
    %v1275 = vmul.f32 %v1143, %v1259
    %v1276 = vmul.f32 %v1144, %v1259
    %v1277 = vmul.f32 %v1145, %v1259
    %v1278 = vmul.f32 %v1146, %v1259
    %v1279 = vmul.f32 %v1147, %v1259
    %v1280 = vmul.f32 %v1148, %v1259
    %v1281 = vmul.f32 %v1149, %v1259
    %v1282 = vmul.f32 %v1150, %v1259
    %v1283 = vmul.f32 %v1151, %v1259
    %v1284 = vmul.f32 %v1152, %v1259
    %v1285 = vmul.f32 %v1153, %v1259
    %v1286 = vmul.f32 %v1154, %v1259
    %v1287 = vmul.f32 %v1155, %v1259
    %v1288 = vmul.f32 %v1156, %v1259
    %v1289 = vmul.f32 %v1157, %v1259
    %v1290 = vmul.f32 %v1158, %v1259
    %v1291 = vmul.f32 %v1159, %v1259
    %v1292 = vmul.f32 %v1160, %v1259
    %v1293 = vmul.f32 %v1161, %v1259
    %v1294 = vmul.f32 %v1162, %v1259
    %v1295 = vmul.f32 %v1163, %v1259
    %v1296 = vmul.f32 %v1164, %v1259
    %v1297 = vmul.f32 %v1165, %v1259
    %v1298 = vmul.f32 %v1166, %v1259
    %v1299 = vmul.f32 %v1167, %v1259
    %v1300 = vmul.f32 %v1168, %v1259
    %v1301 = vmul.f32 %v1169, %v1259
    %v1302 = vmul.f32 %v1170, %v1259
    %v1303 = vmul.f32 %v1171, %v1259
    %v1304 = vmul.f32 %v1172, %v1259
    %v1305 = vmul.f32 %v1173, %v1259
    %v1306 = vmul.f32 %v1174, %v1259
    %v1307 = vmul.f32 %v1175, %v1259
    %v1308 = vmul.f32 %v1176, %v1259
    %v1309 = vmul.f32 %v1177, %v1259
    %v1310 = vmul.f32 %v1178, %v1259
    %v1311 = vmul.f32 %v1179, %v1259
    %v1312 = vmul.f32 %v1180, %v1259
    %v1313 = vmul.f32 %v1181, %v1259
    %v1314 = vmul.f32 %v1182, %v1259
    %v1315 = vmul.f32 %v1183, %v1259
    %v1316 = vmul.f32 %v1184, %v1259
    %v1317 = vmul.f32 %v1185, %v1259
    %v1318 = vmul.f32 %v1186, %v1259
    %v1319 = vmul.f32 %v1187, %v1259
    %v1320 = vmul.f32 %v1188, %v1259
    %v1321 = vmul.f32 %v1189, %v1259
    %v1322 = vmul.f32 %v1190, %v1259
    %v1323 = vmul.f32 %v1191, %v1259
    %v1324 = vmul.f32 %v1192, %v1259
    %v1325 = vmul.f32 %v1193, %v1259
    %v1326 = vmul.f32 %v1194, %v1259
    %v1327 = vmul.f32 %v1195, %v1259
    %v1328 = vmul.f32 %v1196, %v1259
    %v1329 = vmul.f32 %v1197, %v1259
    %v1330 = vmul.f32 %v1198, %v1259
    %v1331 = vmul.f32 %v1199, %v1259
    %v1332 = vmul.f32 %v1200, %v1259
    %v1333 = vmul.f32 %v1201, %v1259
    %v1334 = vmul.f32 %v1202, %v1259
    %v1335 = vmul.f32 %v1203, %v1259
    %v1336 = vmul.f32 %v1204, %v1259
    %v1337 = vmul.f32 %v1205, %v1259
    %v1338 = vmul.f32 %v1206, %v1259
    %v1339 = vmul.f32 %v1207, %v1259
    %v1340 = vmul.f32 %v1208, %v1259
    %v1341 = vmul.f32 %v1209, %v1259
    %v1342 = vmul.f32 %v1210, %v1259
    %v1343 = vmul.f32 %v1211, %v1259
    %v1344 = vmul.f32 %v1212, %v1259
    %v1345 = vmul.f32 %v1213, %v1259
    %v1346 = vmul.f32 %v1214, %v1259
    %v1347 = vmul.f32 %v1215, %v1259
    %v1348 = vmul.f32 %v1216, %v1259
    %v1349 = vmul.f32 %v1217, %v1259
    %v1350 = vmul.f32 %v1218, %v1259
    %v1351 = vmul.f32 %v1219, %v1259
    %v1352 = vmul.f32 %v1220, %v1259
    %v1353 = vmul.f32 %v1221, %v1259
    %v1354 = vmul.f32 %v1222, %v1259
    %v1355 = vmul.f32 %v1223, %v1259
    %v1356 = vmul.f32 %v1224, %v1259
    %v1357 = vmul.f32 %v1225, %v1259
    %v1358 = vmul.f32 %v1226, %v1259
    %v1359 = vmul.f32 %v1227, %v1259
    %v1360 = vmul.f32 %v1228, %v1259
    %v1361 = vmul.f32 %v1229, %v1259
    %v1362 = vmul.f32 %v1230, %v1259
    %v1363 = vmul.f32 %v1231, %v1259
    %v1364 = vmul.f32 %v1232, %v1259
    %v1365 = vmul.f32 %v1233, %v1259
    %v1366 = vmul.f32 %v1234, %v1259
    %v1367 = vmul.f32 %v1235, %v1259
    %v1368 = vmul.f32 %v1236, %v1259
    %v1369 = vmul.f32 %v1237, %v1259
    %v1370 = vmul.f32 %v1238, %v1259
    %v1371 = vmul.f32 %v1239, %v1259
    %v1372 = vmul.f32 %v1240, %v1259
    %v1373 = vmul.f32 %v1241, %v1259
    %v1374 = vmul.f32 %v1242, %v1259
    %v1375 = vmul.f32 %v1243, %v1259
    %v1376 = vmul.f32 %v1244, %v1259
    %v1377 = vmul.f32 %v1245, %v1259
    %v1378 = vmul.f32 %v1246, %v1259
    %v1379 = vmul.f32 %v1247, %v1259
    %v1380 = vmul.f32 %v1248, %v1259
    %v1381 = vmul.f32 %v1249, %v1259
    %v1382 = vmul.f32 %v1250, %v1259
    %v1383 = vmul.f32 %v1251, %v1259
    %v1384 = vmul.f32 %v1252, %v1259
    %v1385 = vmul.f32 %v1253, %v1259
    %v1386 = vmul.f32 %v1254, %v1259
    %v1387 = vmul.f32 %v1255, %v1259
    %v1388 = vmul.f32 %v1256, %v1259
    %v1389 = vsel %vm160, %v1261, 0.0
    %1390 = vadd.xlane.f32.xlu0 %v1389
    %v1391 = vpop.xlane.xlu0 %1390
    %v1392 = vsel %vm160, %v1262, 0.0
    %1393 = vadd.xlane.f32.xlu0 %v1392
    %v1394 = vpop.xlane.xlu0 %1393
    %v1395 = vsel %vm160, %v1263, 0.0
    %1396 = vadd.xlane.f32.xlu0 %v1395
    %v1397 = vpop.xlane.xlu0 %1396
    %v1398 = vsel %vm160, %v1264, 0.0
    %1399 = vadd.xlane.f32.xlu0 %v1398
    %v1400 = vpop.xlane.xlu0 %1399
    %v1401 = vsel %vm160, %v1265, 0.0
    %1402 = vadd.xlane.f32.xlu0 %v1401
    %v1403 = vpop.xlane.xlu0 %1402
    %v1404 = vsel %vm160, %v1266, 0.0
    %1405 = vadd.xlane.f32.xlu0 %v1404
    %v1406 = vpop.xlane.xlu0 %1405
    %v1407 = vsel %vm160, %v1267, 0.0
    %1408 = vadd.xlane.f32.xlu0 %v1407
    %v1409 = vpop.xlane.xlu0 %1408
    %v1410 = vsel %vm160, %v1268, 0.0
    %1411 = vadd.xlane.f32.xlu0 %v1410
    %v1412 = vpop.xlane.xlu0 %1411
    %v1413 = vsel %vm160, %v1269, 0.0
    %1414 = vadd.xlane.f32.xlu0 %v1413
    %v1415 = vpop.xlane.xlu0 %1414
    %v1416 = vsel %vm160, %v1270, 0.0
    %1417 = vadd.xlane.f32.xlu0 %v1416
    %v1418 = vpop.xlane.xlu0 %1417
    %v1419 = vsel %vm160, %v1271, 0.0
    %1420 = vadd.xlane.f32.xlu0 %v1419
    %v1421 = vpop.xlane.xlu0 %1420
    %v1422 = vsel %vm160, %v1272, 0.0
    %1423 = vadd.xlane.f32.xlu0 %v1422
    %v1424 = vpop.xlane.xlu0 %1423
    %v1425 = vsel %vm160, %v1273, 0.0
    %1426 = vadd.xlane.f32.xlu0 %v1425
    %v1427 = vpop.xlane.xlu0 %1426
    %v1428 = vsel %vm160, %v1274, 0.0
    %1429 = vadd.xlane.f32.xlu0 %v1428
    %v1430 = vpop.xlane.xlu0 %1429
    %v1431 = vsel %vm160, %v1275, 0.0
    %1432 = vadd.xlane.f32.xlu0 %v1431
    %v1433 = vpop.xlane.xlu0 %1432
    %v1434 = vsel %vm160, %v1276, 0.0
    %1435 = vadd.xlane.f32.xlu0 %v1434
    %v1436 = vpop.xlane.xlu0 %1435
    %v1437 = vsel %vm160, %v1277, 0.0
    %1438 = vadd.xlane.f32.xlu0 %v1437
    %v1439 = vpop.xlane.xlu0 %1438
    %v1440 = vsel %vm160, %v1278, 0.0
    %1441 = vadd.xlane.f32.xlu0 %v1440
    %v1442 = vpop.xlane.xlu0 %1441
    %v1443 = vsel %vm160, %v1279, 0.0
    %1444 = vadd.xlane.f32.xlu0 %v1443
    %v1445 = vpop.xlane.xlu0 %1444
    %v1446 = vsel %vm160, %v1280, 0.0
    %1447 = vadd.xlane.f32.xlu0 %v1446
    %v1448 = vpop.xlane.xlu0 %1447
    %v1449 = vsel %vm160, %v1281, 0.0
    %1450 = vadd.xlane.f32.xlu0 %v1449
    %v1451 = vpop.xlane.xlu0 %1450
    %v1452 = vsel %vm160, %v1282, 0.0
    %1453 = vadd.xlane.f32.xlu0 %v1452
    %v1454 = vpop.xlane.xlu0 %1453
    %v1455 = vsel %vm160, %v1283, 0.0
    %1456 = vadd.xlane.f32.xlu0 %v1455
    %v1457 = vpop.xlane.xlu0 %1456
    %v1458 = vsel %vm160, %v1284, 0.0
    %1459 = vadd.xlane.f32.xlu0 %v1458
    %v1460 = vpop.xlane.xlu0 %1459
    %v1461 = vsel %vm160, %v1285, 0.0
    %1462 = vadd.xlane.f32.xlu0 %v1461
    %v1463 = vpop.xlane.xlu0 %1462
    %v1464 = vsel %vm160, %v1286, 0.0
    %1465 = vadd.xlane.f32.xlu0 %v1464
    %v1466 = vpop.xlane.xlu0 %1465
    %v1467 = vsel %vm160, %v1287, 0.0
    %1468 = vadd.xlane.f32.xlu0 %v1467
    %v1469 = vpop.xlane.xlu0 %1468
    %v1470 = vsel %vm160, %v1288, 0.0
    %1471 = vadd.xlane.f32.xlu0 %v1470
    %v1472 = vpop.xlane.xlu0 %1471
    %v1473 = vsel %vm160, %v1289, 0.0
    %1474 = vadd.xlane.f32.xlu0 %v1473
    %v1475 = vpop.xlane.xlu0 %1474
    %v1476 = vsel %vm160, %v1290, 0.0
    %1477 = vadd.xlane.f32.xlu0 %v1476
    %v1478 = vpop.xlane.xlu0 %1477
    %v1479 = vsel %vm160, %v1291, 0.0
    %1480 = vadd.xlane.f32.xlu0 %v1479
    %v1481 = vpop.xlane.xlu0 %1480
    %v1482 = vsel %vm160, %v1292, 0.0
    %1483 = vadd.xlane.f32.xlu0 %v1482
    %v1484 = vpop.xlane.xlu0 %1483
    %v1485 = vsel %vm160, %v1293, 0.0
    %1486 = vadd.xlane.f32.xlu0 %v1485
    %v1487 = vpop.xlane.xlu0 %1486
    %v1488 = vsel %vm160, %v1294, 0.0
    %1489 = vadd.xlane.f32.xlu0 %v1488
    %v1490 = vpop.xlane.xlu0 %1489
    %v1491 = vsel %vm160, %v1295, 0.0
    %1492 = vadd.xlane.f32.xlu0 %v1491
    %v1493 = vpop.xlane.xlu0 %1492
    %v1494 = vsel %vm160, %v1296, 0.0
    %1495 = vadd.xlane.f32.xlu0 %v1494
    %v1496 = vpop.xlane.xlu0 %1495
    %v1497 = vsel %vm160, %v1297, 0.0
    %1498 = vadd.xlane.f32.xlu0 %v1497
    %v1499 = vpop.xlane.xlu0 %1498
    %v1500 = vsel %vm160, %v1298, 0.0
    %1501 = vadd.xlane.f32.xlu0 %v1500
    %v1502 = vpop.xlane.xlu0 %1501
    %v1503 = vsel %vm160, %v1299, 0.0
    %1504 = vadd.xlane.f32.xlu0 %v1503
    %v1505 = vpop.xlane.xlu0 %1504
    %v1506 = vsel %vm160, %v1300, 0.0
    %1507 = vadd.xlane.f32.xlu0 %v1506
    %v1508 = vpop.xlane.xlu0 %1507
    %v1509 = vsel %vm160, %v1301, 0.0
    %1510 = vadd.xlane.f32.xlu0 %v1509
    %v1511 = vpop.xlane.xlu0 %1510
    %v1512 = vsel %vm160, %v1302, 0.0
    %1513 = vadd.xlane.f32.xlu0 %v1512
    %v1514 = vpop.xlane.xlu0 %1513
    %v1515 = vsel %vm160, %v1303, 0.0
    %1516 = vadd.xlane.f32.xlu0 %v1515
    %v1517 = vpop.xlane.xlu0 %1516
    %v1518 = vsel %vm160, %v1304, 0.0
    %1519 = vadd.xlane.f32.xlu0 %v1518
    %v1520 = vpop.xlane.xlu0 %1519
    %v1521 = vsel %vm160, %v1305, 0.0
    %1522 = vadd.xlane.f32.xlu0 %v1521
    %v1523 = vpop.xlane.xlu0 %1522
    %v1524 = vsel %vm160, %v1306, 0.0
    %1525 = vadd.xlane.f32.xlu0 %v1524
    %v1526 = vpop.xlane.xlu0 %1525
    %v1527 = vsel %vm160, %v1307, 0.0
    %1528 = vadd.xlane.f32.xlu0 %v1527
    %v1529 = vpop.xlane.xlu0 %1528
    %v1530 = vsel %vm160, %v1308, 0.0
    %1531 = vadd.xlane.f32.xlu0 %v1530
    %v1532 = vpop.xlane.xlu0 %1531
    %v1533 = vsel %vm160, %v1309, 0.0
    %1534 = vadd.xlane.f32.xlu0 %v1533
    %v1535 = vpop.xlane.xlu0 %1534
    %v1536 = vsel %vm160, %v1310, 0.0
    %1537 = vadd.xlane.f32.xlu0 %v1536
    %v1538 = vpop.xlane.xlu0 %1537
    %v1539 = vsel %vm160, %v1311, 0.0
    %1540 = vadd.xlane.f32.xlu0 %v1539
    %v1541 = vpop.xlane.xlu0 %1540
    %v1542 = vsel %vm160, %v1312, 0.0
    %1543 = vadd.xlane.f32.xlu0 %v1542
    %v1544 = vpop.xlane.xlu0 %1543
    %v1545 = vsel %vm160, %v1313, 0.0
    %1546 = vadd.xlane.f32.xlu0 %v1545
    %v1547 = vpop.xlane.xlu0 %1546
    %v1548 = vsel %vm160, %v1314, 0.0
    %1549 = vadd.xlane.f32.xlu0 %v1548
    %v1550 = vpop.xlane.xlu0 %1549
    %v1551 = vsel %vm160, %v1315, 0.0
    %1552 = vadd.xlane.f32.xlu0 %v1551
    %v1553 = vpop.xlane.xlu0 %1552
    %v1554 = vsel %vm160, %v1316, 0.0
    %1555 = vadd.xlane.f32.xlu0 %v1554
    %v1556 = vpop.xlane.xlu0 %1555
    %v1557 = vsel %vm160, %v1317, 0.0
    %1558 = vadd.xlane.f32.xlu0 %v1557
    %v1559 = vpop.xlane.xlu0 %1558
    %v1560 = vsel %vm160, %v1318, 0.0
    %1561 = vadd.xlane.f32.xlu0 %v1560
    %v1562 = vpop.xlane.xlu0 %1561
    %v1563 = vsel %vm160, %v1319, 0.0
    %1564 = vadd.xlane.f32.xlu0 %v1563
    %v1565 = vpop.xlane.xlu0 %1564
    %v1566 = vsel %vm160, %v1320, 0.0
    %1567 = vadd.xlane.f32.xlu0 %v1566
    %v1568 = vpop.xlane.xlu0 %1567
    %v1569 = vsel %vm160, %v1321, 0.0
    %1570 = vadd.xlane.f32.xlu0 %v1569
    %v1571 = vpop.xlane.xlu0 %1570
    %v1572 = vsel %vm160, %v1322, 0.0
    %1573 = vadd.xlane.f32.xlu0 %v1572
    %v1574 = vpop.xlane.xlu0 %1573
    %v1575 = vsel %vm160, %v1323, 0.0
    %1576 = vadd.xlane.f32.xlu0 %v1575
    %v1577 = vpop.xlane.xlu0 %1576
    %v1578 = vsel %vm160, %v1324, 0.0
    %1579 = vadd.xlane.f32.xlu0 %v1578
    %v1580 = vpop.xlane.xlu0 %1579
    %v1581 = vsel %vm160, %v1325, 0.0
    %1582 = vadd.xlane.f32.xlu0 %v1581
    %v1583 = vpop.xlane.xlu0 %1582
    %v1584 = vsel %vm160, %v1326, 0.0
    %1585 = vadd.xlane.f32.xlu0 %v1584
    %v1586 = vpop.xlane.xlu0 %1585
    %v1587 = vsel %vm160, %v1327, 0.0
    %1588 = vadd.xlane.f32.xlu0 %v1587
    %v1589 = vpop.xlane.xlu0 %1588
    %v1590 = vsel %vm160, %v1328, 0.0
    %1591 = vadd.xlane.f32.xlu0 %v1590
    %v1592 = vpop.xlane.xlu0 %1591
    %v1593 = vsel %vm160, %v1329, 0.0
    %1594 = vadd.xlane.f32.xlu0 %v1593
    %v1595 = vpop.xlane.xlu0 %1594
    %v1596 = vsel %vm160, %v1330, 0.0
    %1597 = vadd.xlane.f32.xlu0 %v1596
    %v1598 = vpop.xlane.xlu0 %1597
    %v1599 = vsel %vm160, %v1331, 0.0
    %1600 = vadd.xlane.f32.xlu0 %v1599
    %v1601 = vpop.xlane.xlu0 %1600
    %v1602 = vsel %vm160, %v1332, 0.0
    %1603 = vadd.xlane.f32.xlu0 %v1602
    %v1604 = vpop.xlane.xlu0 %1603
    %v1605 = vsel %vm160, %v1333, 0.0
    %1606 = vadd.xlane.f32.xlu0 %v1605
    %v1607 = vpop.xlane.xlu0 %1606
    %v1608 = vsel %vm160, %v1334, 0.0
    %1609 = vadd.xlane.f32.xlu0 %v1608
    %v1610 = vpop.xlane.xlu0 %1609
    %v1611 = vsel %vm160, %v1335, 0.0
    %1612 = vadd.xlane.f32.xlu0 %v1611
    %v1613 = vpop.xlane.xlu0 %1612
    %v1614 = vsel %vm160, %v1336, 0.0
    %1615 = vadd.xlane.f32.xlu0 %v1614
    %v1616 = vpop.xlane.xlu0 %1615
    %v1617 = vsel %vm160, %v1337, 0.0
    %1618 = vadd.xlane.f32.xlu0 %v1617
    %v1619 = vpop.xlane.xlu0 %1618
    %v1620 = vsel %vm160, %v1338, 0.0
    %1621 = vadd.xlane.f32.xlu0 %v1620
    %v1622 = vpop.xlane.xlu0 %1621
    %v1623 = vsel %vm160, %v1339, 0.0
    %1624 = vadd.xlane.f32.xlu0 %v1623
    %v1625 = vpop.xlane.xlu0 %1624
    %v1626 = vsel %vm160, %v1340, 0.0
    %1627 = vadd.xlane.f32.xlu0 %v1626
    %v1628 = vpop.xlane.xlu0 %1627
    %v1629 = vsel %vm160, %v1341, 0.0
    %1630 = vadd.xlane.f32.xlu0 %v1629
    %v1631 = vpop.xlane.xlu0 %1630
    %v1632 = vsel %vm160, %v1342, 0.0
    %1633 = vadd.xlane.f32.xlu0 %v1632
    %v1634 = vpop.xlane.xlu0 %1633
    %v1635 = vsel %vm160, %v1343, 0.0
    %1636 = vadd.xlane.f32.xlu0 %v1635
    %v1637 = vpop.xlane.xlu0 %1636
    %v1638 = vsel %vm160, %v1344, 0.0
    %1639 = vadd.xlane.f32.xlu0 %v1638
    %v1640 = vpop.xlane.xlu0 %1639
    %v1641 = vsel %vm160, %v1345, 0.0
    %1642 = vadd.xlane.f32.xlu0 %v1641
    %v1643 = vpop.xlane.xlu0 %1642
    %v1644 = vsel %vm160, %v1346, 0.0
    %1645 = vadd.xlane.f32.xlu0 %v1644
    %v1646 = vpop.xlane.xlu0 %1645
    %v1647 = vsel %vm160, %v1347, 0.0
    %1648 = vadd.xlane.f32.xlu0 %v1647
    %v1649 = vpop.xlane.xlu0 %1648
    %v1650 = vsel %vm160, %v1348, 0.0
    %1651 = vadd.xlane.f32.xlu0 %v1650
    %v1652 = vpop.xlane.xlu0 %1651
    %v1653 = vsel %vm160, %v1349, 0.0
    %1654 = vadd.xlane.f32.xlu0 %v1653
    %v1655 = vpop.xlane.xlu0 %1654
    %v1656 = vsel %vm160, %v1350, 0.0
    %1657 = vadd.xlane.f32.xlu0 %v1656
    %v1658 = vpop.xlane.xlu0 %1657
    %v1659 = vsel %vm160, %v1351, 0.0
    %1660 = vadd.xlane.f32.xlu0 %v1659
    %v1661 = vpop.xlane.xlu0 %1660
    %v1662 = vsel %vm160, %v1352, 0.0
    %1663 = vadd.xlane.f32.xlu0 %v1662
    %v1664 = vpop.xlane.xlu0 %1663
    %v1665 = vsel %vm160, %v1353, 0.0
    %1666 = vadd.xlane.f32.xlu0 %v1665
    %v1667 = vpop.xlane.xlu0 %1666
    %v1668 = vsel %vm160, %v1354, 0.0
    %1669 = vadd.xlane.f32.xlu0 %v1668
    %v1670 = vpop.xlane.xlu0 %1669
    %v1671 = vsel %vm160, %v1355, 0.0
    %1672 = vadd.xlane.f32.xlu0 %v1671
    %v1673 = vpop.xlane.xlu0 %1672
    %v1674 = vsel %vm160, %v1356, 0.0
    %1675 = vadd.xlane.f32.xlu0 %v1674
    %v1676 = vpop.xlane.xlu0 %1675
    %v1677 = vsel %vm160, %v1357, 0.0
    %1678 = vadd.xlane.f32.xlu0 %v1677
    %v1679 = vpop.xlane.xlu0 %1678
    %v1680 = vsel %vm160, %v1358, 0.0
    %1681 = vadd.xlane.f32.xlu0 %v1680
    %v1682 = vpop.xlane.xlu0 %1681
    %v1683 = vsel %vm160, %v1359, 0.0
    %1684 = vadd.xlane.f32.xlu0 %v1683
    %v1685 = vpop.xlane.xlu0 %1684
    %v1686 = vsel %vm160, %v1360, 0.0
    %1687 = vadd.xlane.f32.xlu0 %v1686
    %v1688 = vpop.xlane.xlu0 %1687
    %v1689 = vsel %vm160, %v1361, 0.0
    %1690 = vadd.xlane.f32.xlu0 %v1689
    %v1691 = vpop.xlane.xlu0 %1690
    %v1692 = vsel %vm160, %v1362, 0.0
    %1693 = vadd.xlane.f32.xlu0 %v1692
    %v1694 = vpop.xlane.xlu0 %1693
    %v1695 = vsel %vm160, %v1363, 0.0
    %1696 = vadd.xlane.f32.xlu0 %v1695
    %v1697 = vpop.xlane.xlu0 %1696
    %v1698 = vsel %vm160, %v1364, 0.0
    %1699 = vadd.xlane.f32.xlu0 %v1698
    %v1700 = vpop.xlane.xlu0 %1699
    %v1701 = vsel %vm160, %v1365, 0.0
    %1702 = vadd.xlane.f32.xlu0 %v1701
    %v1703 = vpop.xlane.xlu0 %1702
    %v1704 = vsel %vm160, %v1366, 0.0
    %1705 = vadd.xlane.f32.xlu0 %v1704
    %v1706 = vpop.xlane.xlu0 %1705
    %v1707 = vsel %vm160, %v1367, 0.0
    %1708 = vadd.xlane.f32.xlu0 %v1707
    %v1709 = vpop.xlane.xlu0 %1708
    %v1710 = vsel %vm160, %v1368, 0.0
    %1711 = vadd.xlane.f32.xlu0 %v1710
    %v1712 = vpop.xlane.xlu0 %1711
    %v1713 = vsel %vm160, %v1369, 0.0
    %1714 = vadd.xlane.f32.xlu0 %v1713
    %v1715 = vpop.xlane.xlu0 %1714
    %v1716 = vsel %vm160, %v1370, 0.0
    %1717 = vadd.xlane.f32.xlu0 %v1716
    %v1718 = vpop.xlane.xlu0 %1717
    %v1719 = vsel %vm160, %v1371, 0.0
    %1720 = vadd.xlane.f32.xlu0 %v1719
    %v1721 = vpop.xlane.xlu0 %1720
    %v1722 = vsel %vm160, %v1372, 0.0
    %1723 = vadd.xlane.f32.xlu0 %v1722
    %v1724 = vpop.xlane.xlu0 %1723
    %v1725 = vsel %vm160, %v1373, 0.0
    %1726 = vadd.xlane.f32.xlu0 %v1725
    %v1727 = vpop.xlane.xlu0 %1726
    %v1728 = vsel %vm160, %v1374, 0.0
    %1729 = vadd.xlane.f32.xlu0 %v1728
    %v1730 = vpop.xlane.xlu0 %1729
    %v1731 = vsel %vm160, %v1375, 0.0
    %1732 = vadd.xlane.f32.xlu0 %v1731
    %v1733 = vpop.xlane.xlu0 %1732
    %v1734 = vsel %vm160, %v1376, 0.0
    %1735 = vadd.xlane.f32.xlu0 %v1734
    %v1736 = vpop.xlane.xlu0 %1735
    %v1737 = vsel %vm160, %v1377, 0.0
    %1738 = vadd.xlane.f32.xlu0 %v1737
    %v1739 = vpop.xlane.xlu0 %1738
    %v1740 = vsel %vm160, %v1378, 0.0
    %1741 = vadd.xlane.f32.xlu0 %v1740
    %v1742 = vpop.xlane.xlu0 %1741
    %v1743 = vsel %vm160, %v1379, 0.0
    %1744 = vadd.xlane.f32.xlu0 %v1743
    %v1745 = vpop.xlane.xlu0 %1744
    %v1746 = vsel %vm160, %v1380, 0.0
    %1747 = vadd.xlane.f32.xlu0 %v1746
    %v1748 = vpop.xlane.xlu0 %1747
    %v1749 = vsel %vm160, %v1381, 0.0
    %1750 = vadd.xlane.f32.xlu0 %v1749
    %v1751 = vpop.xlane.xlu0 %1750
    %v1752 = vsel %vm160, %v1382, 0.0
    %1753 = vadd.xlane.f32.xlu0 %v1752
    %v1754 = vpop.xlane.xlu0 %1753
    %v1755 = vsel %vm160, %v1383, 0.0
    %1756 = vadd.xlane.f32.xlu0 %v1755
    %v1757 = vpop.xlane.xlu0 %1756
    %v1758 = vsel %vm160, %v1384, 0.0
    %1759 = vadd.xlane.f32.xlu0 %v1758
    %v1760 = vpop.xlane.xlu0 %1759
    %v1761 = vsel %vm160, %v1385, 0.0
    %1762 = vadd.xlane.f32.xlu0 %v1761
    %v1763 = vpop.xlane.xlu0 %1762
    %v1764 = vsel %vm160, %v1386, 0.0
    %1765 = vadd.xlane.f32.xlu0 %v1764
    %v1766 = vpop.xlane.xlu0 %1765
    %v1767 = vsel %vm160, %v1387, 0.0
    %1768 = vadd.xlane.f32.xlu0 %v1767
    %v1769 = vpop.xlane.xlu0 %1768
    %v1770 = vsel %vm160, %v1388, 0.0
    %1771 = vadd.xlane.f32.xlu0 %v1770
    %v1772 = vpop.xlane.xlu0 %1771
    %v1773 = vlaneseq
    %v1774 = vand.u32 %v1773, 127
    %vm1775 = vcmp.lt.s32.totalorder %v1774, 16
    %v1904 = vperm.slane %v1391, %v1774
    %v1905 = vadd.s32 %v1774, 4294967288
    %v1906 = vperm.slane %v1394, %v1905
    %vm1907 = vcmask 130112
    %v1908 = vsel %vm1907, %v1906, %v1904
    %v1909 = vadd.s32 %v1774, 4294967280
    %v1910 = vperm.slane %v1397, %v1909
    %vm1911 = vcmask 195712
    %v1912 = vsel %vm1911, %v1910, %v1908
    %v1913 = vadd.s32 %v1774, 4294967272
    %v1914 = vperm.slane %v1400, %v1913
    %vm1915 = vcmask 261312
    %v1916 = vsel %vm1915, %v1914, %v1912
    %v1917 = vadd.s32 %v1774, 4294967264
    %v1918 = vperm.slane %v1403, %v1917
    %vm1919 = vcmask 326912
    %v1920 = vsel %vm1919, %v1918, %v1916
    %v1921 = vadd.s32 %v1774, 4294967256
    %v1922 = vperm.slane %v1406, %v1921
    %vm1923 = vcmask 392512
    %v1924 = vsel %vm1923, %v1922, %v1920
    %v1925 = vadd.s32 %v1774, 4294967248
    %v1926 = vperm.slane %v1409, %v1925
    %vm1927 = vcmask 458112
    %v1928 = vsel %vm1927, %v1926, %v1924
    %v1929 = vadd.s32 %v1774, 4294967240
    %v1930 = vperm.slane %v1412, %v1929
    %vm1931 = vcmask 523712
    %v1932 = vsel %vm1931, %v1930, %v1928
    %v1933 = vadd.s32 %v1774, 4294967232
    %v1934 = vperm.slane %v1415, %v1933
    %vm1935 = vcmask 589312
    %v1936 = vsel %vm1935, %v1934, %v1932
    %v1937 = vadd.s32 %v1774, 4294967224
    %v1938 = vperm.slane %v1418, %v1937
    %vm1939 = vcmask 654912
    %v1940 = vsel %vm1939, %v1938, %v1936
    %v1941 = vadd.s32 %v1774, 4294967216
    %v1942 = vperm.slane %v1421, %v1941
    %vm1943 = vcmask 720512
    %v1944 = vsel %vm1943, %v1942, %v1940
    %v1945 = vadd.s32 %v1774, 4294967208
    %v1946 = vperm.slane %v1424, %v1945
    %vm1947 = vcmask 786112
    %v1948 = vsel %vm1947, %v1946, %v1944
    %v1949 = vadd.s32 %v1774, 4294967200
    %v1950 = vperm.slane %v1427, %v1949
    %vm1951 = vcmask 851712
    %v1952 = vsel %vm1951, %v1950, %v1948
    %v1953 = vadd.s32 %v1774, 4294967192
    %v1954 = vperm.slane %v1430, %v1953
    %vm1955 = vcmask 917312
    %v1956 = vsel %vm1955, %v1954, %v1952
    %v1957 = vadd.s32 %v1774, 4294967184
    %v1958 = vperm.slane %v1433, %v1957
    %vm1959 = vcmask 982912
    %v1960 = vsel %vm1959, %v1958, %v1956
    %v1961 = vadd.s32 %v1774, 4294967176
    %v1962 = vperm.slane %v1436, %v1961
    %vm1963 = vcmask 1048512
    %v1964 = vsel %vm1963, %v1962, %v1960
    %v1965 = vperm.slane %v1439, %v1774
    %v1966 = vperm.slane %v1442, %v1905
    %v1967 = vsel %vm1907, %v1966, %v1965
    %v1968 = vperm.slane %v1445, %v1909
    %v1969 = vsel %vm1911, %v1968, %v1967
    %v1970 = vperm.slane %v1448, %v1913
    %v1971 = vsel %vm1915, %v1970, %v1969
    %v1972 = vperm.slane %v1451, %v1917
    %v1973 = vsel %vm1919, %v1972, %v1971
    %v1974 = vperm.slane %v1454, %v1921
    %v1975 = vsel %vm1923, %v1974, %v1973
    %v1976 = vperm.slane %v1457, %v1925
    %v1977 = vsel %vm1927, %v1976, %v1975
    %v1978 = vperm.slane %v1460, %v1929
    %v1979 = vsel %vm1931, %v1978, %v1977
    %v1980 = vperm.slane %v1463, %v1933
    %v1981 = vsel %vm1935, %v1980, %v1979
    %v1982 = vperm.slane %v1466, %v1937
    %v1983 = vsel %vm1939, %v1982, %v1981
    %v1984 = vperm.slane %v1469, %v1941
    %v1985 = vsel %vm1943, %v1984, %v1983
    %v1986 = vperm.slane %v1472, %v1945
    %v1987 = vsel %vm1947, %v1986, %v1985
    %v1988 = vperm.slane %v1475, %v1949
    %v1989 = vsel %vm1951, %v1988, %v1987
    %v1990 = vperm.slane %v1478, %v1953
    %v1991 = vsel %vm1955, %v1990, %v1989
    %v1992 = vperm.slane %v1481, %v1957
    %v1993 = vsel %vm1959, %v1992, %v1991
    %v1994 = vperm.slane %v1484, %v1961
    %v1995 = vsel %vm1963, %v1994, %v1993
    %v1996 = vperm.slane %v1487, %v1774
    %v1997 = vperm.slane %v1490, %v1905
    %v1998 = vsel %vm1907, %v1997, %v1996
    %v1999 = vperm.slane %v1493, %v1909
    %v2000 = vsel %vm1911, %v1999, %v1998
    %v2001 = vperm.slane %v1496, %v1913
    %v2002 = vsel %vm1915, %v2001, %v2000
    %v2003 = vperm.slane %v1499, %v1917
    %v2004 = vsel %vm1919, %v2003, %v2002
    %v2005 = vperm.slane %v1502, %v1921
    %v2006 = vsel %vm1923, %v2005, %v2004
    %v2007 = vperm.slane %v1505, %v1925
    %v2008 = vsel %vm1927, %v2007, %v2006
    %v2009 = vperm.slane %v1508, %v1929
    %v2010 = vsel %vm1931, %v2009, %v2008
    %v2011 = vperm.slane %v1511, %v1933
    %v2012 = vsel %vm1935, %v2011, %v2010
    %v2013 = vperm.slane %v1514, %v1937
    %v2014 = vsel %vm1939, %v2013, %v2012
    %v2015 = vperm.slane %v1517, %v1941
    %v2016 = vsel %vm1943, %v2015, %v2014
    %v2017 = vperm.slane %v1520, %v1945
    %v2018 = vsel %vm1947, %v2017, %v2016
    %v2019 = vperm.slane %v1523, %v1949
    %v2020 = vsel %vm1951, %v2019, %v2018
    %v2021 = vperm.slane %v1526, %v1953
    %v2022 = vsel %vm1955, %v2021, %v2020
    %v2023 = vperm.slane %v1529, %v1957
    %v2024 = vsel %vm1959, %v2023, %v2022
    %v2025 = vperm.slane %v1532, %v1961
    %v2026 = vsel %vm1963, %v2025, %v2024
    %v2027 = vperm.slane %v1535, %v1774
    %v2028 = vperm.slane %v1538, %v1905
    %v2029 = vsel %vm1907, %v2028, %v2027
    %v2030 = vperm.slane %v1541, %v1909
    %v2031 = vsel %vm1911, %v2030, %v2029
    %v2032 = vperm.slane %v1544, %v1913
    %v2033 = vsel %vm1915, %v2032, %v2031
    %v2034 = vperm.slane %v1547, %v1917
    %v2035 = vsel %vm1919, %v2034, %v2033
    %v2036 = vperm.slane %v1550, %v1921
    %v2037 = vsel %vm1923, %v2036, %v2035
    %v2038 = vperm.slane %v1553, %v1925
    %v2039 = vsel %vm1927, %v2038, %v2037
    %v2040 = vperm.slane %v1556, %v1929
    %v2041 = vsel %vm1931, %v2040, %v2039
    %v2042 = vperm.slane %v1559, %v1933
    %v2043 = vsel %vm1935, %v2042, %v2041
    %v2044 = vperm.slane %v1562, %v1937
    %v2045 = vsel %vm1939, %v2044, %v2043
    %v2046 = vperm.slane %v1565, %v1941
    %v2047 = vsel %vm1943, %v2046, %v2045
    %v2048 = vperm.slane %v1568, %v1945
    %v2049 = vsel %vm1947, %v2048, %v2047
    %v2050 = vperm.slane %v1571, %v1949
    %v2051 = vsel %vm1951, %v2050, %v2049
    %v2052 = vperm.slane %v1574, %v1953
    %v2053 = vsel %vm1955, %v2052, %v2051
    %v2054 = vperm.slane %v1577, %v1957
    %v2055 = vsel %vm1959, %v2054, %v2053
    %v2056 = vperm.slane %v1580, %v1961
    %v2057 = vsel %vm1963, %v2056, %v2055
    %v2058 = vperm.slane %v1583, %v1774
    %v2059 = vperm.slane %v1586, %v1905
    %v2060 = vsel %vm1907, %v2059, %v2058
    %v2061 = vperm.slane %v1589, %v1909
    %v2062 = vsel %vm1911, %v2061, %v2060
    %v2063 = vperm.slane %v1592, %v1913
    %v2064 = vsel %vm1915, %v2063, %v2062
    %v2065 = vperm.slane %v1595, %v1917
    %v2066 = vsel %vm1919, %v2065, %v2064
    %v2067 = vperm.slane %v1598, %v1921
    %v2068 = vsel %vm1923, %v2067, %v2066
    %v2069 = vperm.slane %v1601, %v1925
    %v2070 = vsel %vm1927, %v2069, %v2068
    %v2071 = vperm.slane %v1604, %v1929
    %v2072 = vsel %vm1931, %v2071, %v2070
    %v2073 = vperm.slane %v1607, %v1933
    %v2074 = vsel %vm1935, %v2073, %v2072
    %v2075 = vperm.slane %v1610, %v1937
    %v2076 = vsel %vm1939, %v2075, %v2074
    %v2077 = vperm.slane %v1613, %v1941
    %v2078 = vsel %vm1943, %v2077, %v2076
    %v2079 = vperm.slane %v1616, %v1945
    %v2080 = vsel %vm1947, %v2079, %v2078
    %v2081 = vperm.slane %v1619, %v1949
    %v2082 = vsel %vm1951, %v2081, %v2080
    %v2083 = vperm.slane %v1622, %v1953
    %v2084 = vsel %vm1955, %v2083, %v2082
    %v2085 = vperm.slane %v1625, %v1957
    %v2086 = vsel %vm1959, %v2085, %v2084
    %v2087 = vperm.slane %v1628, %v1961
    %v2088 = vsel %vm1963, %v2087, %v2086
    %v2089 = vperm.slane %v1631, %v1774
    %v2090 = vperm.slane %v1634, %v1905
    %v2091 = vsel %vm1907, %v2090, %v2089
    %v2092 = vperm.slane %v1637, %v1909
    %v2093 = vsel %vm1911, %v2092, %v2091
    %v2094 = vperm.slane %v1640, %v1913
    %v2095 = vsel %vm1915, %v2094, %v2093
    %v2096 = vperm.slane %v1643, %v1917
    %v2097 = vsel %vm1919, %v2096, %v2095
    %v2098 = vperm.slane %v1646, %v1921
    %v2099 = vsel %vm1923, %v2098, %v2097
    %v2100 = vperm.slane %v1649, %v1925
    %v2101 = vsel %vm1927, %v2100, %v2099
    %v2102 = vperm.slane %v1652, %v1929
    %v2103 = vsel %vm1931, %v2102, %v2101
    %v2104 = vperm.slane %v1655, %v1933
    %v2105 = vsel %vm1935, %v2104, %v2103
    %v2106 = vperm.slane %v1658, %v1937
    %v2107 = vsel %vm1939, %v2106, %v2105
    %v2108 = vperm.slane %v1661, %v1941
    %v2109 = vsel %vm1943, %v2108, %v2107
    %v2110 = vperm.slane %v1664, %v1945
    %v2111 = vsel %vm1947, %v2110, %v2109
    %v2112 = vperm.slane %v1667, %v1949
    %v2113 = vsel %vm1951, %v2112, %v2111
    %v2114 = vperm.slane %v1670, %v1953
    %v2115 = vsel %vm1955, %v2114, %v2113
    %v2116 = vperm.slane %v1673, %v1957
    %v2117 = vsel %vm1959, %v2116, %v2115
    %v2118 = vperm.slane %v1676, %v1961
    %v2119 = vsel %vm1963, %v2118, %v2117
    %v2120 = vperm.slane %v1679, %v1774
    %v2121 = vperm.slane %v1682, %v1905
    %v2122 = vsel %vm1907, %v2121, %v2120
    %v2123 = vperm.slane %v1685, %v1909
    %v2124 = vsel %vm1911, %v2123, %v2122
    %v2125 = vperm.slane %v1688, %v1913
    %v2126 = vsel %vm1915, %v2125, %v2124
    %v2127 = vperm.slane %v1691, %v1917
    %v2128 = vsel %vm1919, %v2127, %v2126
    %v2129 = vperm.slane %v1694, %v1921
    %v2130 = vsel %vm1923, %v2129, %v2128
    %v2131 = vperm.slane %v1697, %v1925
    %v2132 = vsel %vm1927, %v2131, %v2130
    %v2133 = vperm.slane %v1700, %v1929
    %v2134 = vsel %vm1931, %v2133, %v2132
    %v2135 = vperm.slane %v1703, %v1933
    %v2136 = vsel %vm1935, %v2135, %v2134
    %v2137 = vperm.slane %v1706, %v1937
    %v2138 = vsel %vm1939, %v2137, %v2136
    %v2139 = vperm.slane %v1709, %v1941
    %v2140 = vsel %vm1943, %v2139, %v2138
    %v2141 = vperm.slane %v1712, %v1945
    %v2142 = vsel %vm1947, %v2141, %v2140
    %v2143 = vperm.slane %v1715, %v1949
    %v2144 = vsel %vm1951, %v2143, %v2142
    %v2145 = vperm.slane %v1718, %v1953
    %v2146 = vsel %vm1955, %v2145, %v2144
    %v2147 = vperm.slane %v1721, %v1957
    %v2148 = vsel %vm1959, %v2147, %v2146
    %v2149 = vperm.slane %v1724, %v1961
    %v2150 = vsel %vm1963, %v2149, %v2148
    %v2151 = vperm.slane %v1727, %v1774
    %v2152 = vperm.slane %v1730, %v1905
    %v2153 = vsel %vm1907, %v2152, %v2151
    %v2154 = vperm.slane %v1733, %v1909
    %v2155 = vsel %vm1911, %v2154, %v2153
    %v2156 = vperm.slane %v1736, %v1913
    %v2157 = vsel %vm1915, %v2156, %v2155
    %v2158 = vperm.slane %v1739, %v1917
    %v2159 = vsel %vm1919, %v2158, %v2157
    %v2160 = vperm.slane %v1742, %v1921
    %v2161 = vsel %vm1923, %v2160, %v2159
    %v2162 = vperm.slane %v1745, %v1925
    %v2163 = vsel %vm1927, %v2162, %v2161
    %v2164 = vperm.slane %v1748, %v1929
    %v2165 = vsel %vm1931, %v2164, %v2163
    %v2166 = vperm.slane %v1751, %v1933
    %v2167 = vsel %vm1935, %v2166, %v2165
    %v2168 = vperm.slane %v1754, %v1937
    %v2169 = vsel %vm1939, %v2168, %v2167
    %v2170 = vperm.slane %v1757, %v1941
    %v2171 = vsel %vm1943, %v2170, %v2169
    %v2172 = vperm.slane %v1760, %v1945
    %v2173 = vsel %vm1947, %v2172, %v2171
    %v2174 = vperm.slane %v1763, %v1949
    %v2175 = vsel %vm1951, %v2174, %v2173
    %v2176 = vperm.slane %v1766, %v1953
    %v2177 = vsel %vm1955, %v2176, %v2175
    %v2178 = vperm.slane %v1769, %v1957
    %v2179 = vsel %vm1959, %v2178, %v2177
    %v2180 = vperm.slane %v1772, %v1961
    %v2181 = vsel %vm1963, %v2180, %v2179
    %vm2182 = vcmask 1041409
    %v2183 = vsel %vm2182, %v1995, %v1964
    %vm2184 = vcmask 1042434
    %v2185 = vsel %vm2184, %v2026, %v2183
    %vm2186 = vcmask 1043459
    %v2187 = vsel %vm2186, %v2057, %v2185
    %vm2188 = vcmask 1044484
    %v2189 = vsel %vm2188, %v2088, %v2187
    %vm2190 = vcmask 1045509
    %v2191 = vsel %vm2190, %v2119, %v2189
    %vm2192 = vcmask 1046534
    %v2193 = vsel %vm2192, %v2150, %v2191
    %vm2194 = vcmask 1047559
    %v2195 = vsel %vm2194, %v2181, %v2193
    %v2197 = vsel %vm1775, %v2195, -1e+30
    %2198 = vmax.xlane.f32.xlu0 %v2197
    %v2199 = vpop.xlane.xlu0 %2198
    %v2200 = vsub.f32 %v2197, %v2199
    %v2201 = vmul.f32 %v2200, 1.442695
    %v2202 = vpow.pop %v2201
    %2203 = vadd.xlane.f32.xlu0 %v2202
    %v2204 = vpop.xlane.xlu0 %2203
    %v2205 = vrcp.pop %v2204
    %v2206 = vmul.f32 %v2204, %v2205
    %v2207 = vsub.f32 1.0, %v2206
    %v2208 = vmul.f32 %v2205, %v2207
    %v2209 = vadd.f32 %v2205, %v2208
    %vm2210 = vweird.f32 %v2204
    %vm2211 = vweird.f32 %v2205
    %vm2212 = vmor %vm2210, %vm2211
    %v2213 = vsel %vm2212, %v2205, %v2209
    %v2214 = vand.u32 2147483647, %v2204
    %vm2215 = vcmp.eq.f32.partialorder %v2214, 8.507059e+37
    %v2216 = vand.u32 %v2204, 2147483648
    %v2217 = vor.u32 1.1754944e-38, %v2216
    %v2218 = vsel %vm2215, %v2217, %v2213
    %v2219 = vmul.f32 %v2202, %v2218
    %2220 = vst [vmem:[#allocation4] sm:$0xff] %v2219
    %v2221 = vperm.slane %v2219, 0
    %v2222 = vlaneseq
    %v2223 = vshrl.u32 %v2222, 7
    %2225 = vset.pattern.permute.xlu0 %v2223
    %2226 = vperm.xlu0 %2225, %v2221
    %v2227 = vpop.permute.xlu0 %2226
    %v2228 = vlaneseq
    %v2229 = vshrl.u32 %v2228, 7
    %v2230 = vadd.s32 %v2229, 8
    %2231 = vset.pattern.permute.xlu0 %v2230
    %2232 = vperm.xlu0 %2231, %v2221
    %v2233 = vpop.permute.xlu0 %2232
    %v2234 = vlaneseq
    %v2235 = vshrl.u32 %v2234, 7
    %v2236 = vadd.s32 %v2235, 16
    %2237 = vset.pattern.permute.xlu0 %v2236
    %2238 = vperm.xlu0 %2237, %v2221
    %v2239 = vpop.permute.xlu0 %2238
    %v2240 = vlaneseq
    %v2241 = vshrl.u32 %v2240, 7
    %v2242 = vadd.s32 %v2241, 24
    %2243 = vset.pattern.permute.xlu0 %v2242
    %2244 = vperm.xlu0 %2243, %v2221
    %v2245 = vpop.permute.xlu0 %2244
    %v2246 = vlaneseq
    %v2247 = vshrl.u32 %v2246, 7
    %v2248 = vadd.s32 %v2247, 32
    %2249 = vset.pattern.permute.xlu0 %v2248
    %2250 = vperm.xlu0 %2249, %v2221
    %v2251 = vpop.permute.xlu0 %2250
    %v2252 = vlaneseq
    %v2253 = vshrl.u32 %v2252, 7
    %v2254 = vadd.s32 %v2253, 40
    %2255 = vset.pattern.permute.xlu0 %v2254
    %2256 = vperm.xlu0 %2255, %v2221
    %v2257 = vpop.permute.xlu0 %2256
    %v2258 = vlaneseq
    %v2259 = vshrl.u32 %v2258, 7
    %v2260 = vadd.s32 %v2259, 48
    %2261 = vset.pattern.permute.xlu0 %v2260
    %2262 = vperm.xlu0 %2261, %v2221
    %v2263 = vpop.permute.xlu0 %2262
    %v2264 = vlaneseq
    %v2265 = vshrl.u32 %v2264, 7
    %v2266 = vadd.s32 %v2265, 56
    %2267 = vset.pattern.permute.xlu0 %v2266
    %2268 = vperm.xlu0 %2267, %v2221
    %v2269 = vpop.permute.xlu0 %2268
    %v2270 = vlaneseq
    %v2271 = vshrl.u32 %v2270, 7
    %v2272 = vadd.s32 %v2271, 64
    %2273 = vset.pattern.permute.xlu0 %v2272
    %2274 = vperm.xlu0 %2273, %v2221
    %v2275 = vpop.permute.xlu0 %2274
    %v2276 = vlaneseq
    %v2277 = vshrl.u32 %v2276, 7
    %v2278 = vadd.s32 %v2277, 72
    %2279 = vset.pattern.permute.xlu0 %v2278
    %2280 = vperm.xlu0 %2279, %v2221
    %v2281 = vpop.permute.xlu0 %2280
    %v2282 = vlaneseq
    %v2283 = vshrl.u32 %v2282, 7
    %v2284 = vadd.s32 %v2283, 80
    %2285 = vset.pattern.permute.xlu0 %v2284
    %2286 = vperm.xlu0 %2285, %v2221
    %v2287 = vpop.permute.xlu0 %2286
    %v2288 = vlaneseq
    %v2289 = vshrl.u32 %v2288, 7
    %v2290 = vadd.s32 %v2289, 88
    %2291 = vset.pattern.permute.xlu0 %v2290
    %2292 = vperm.xlu0 %2291, %v2221
    %v2293 = vpop.permute.xlu0 %2292
    %v2294 = vlaneseq
    %v2295 = vshrl.u32 %v2294, 7
    %v2296 = vadd.s32 %v2295, 96
    %2297 = vset.pattern.permute.xlu0 %v2296
    %2298 = vperm.xlu0 %2297, %v2221
    %v2299 = vpop.permute.xlu0 %2298
    %v2300 = vlaneseq
    %v2301 = vshrl.u32 %v2300, 7
    %v2302 = vadd.s32 %v2301, 104
    %2303 = vset.pattern.permute.xlu0 %v2302
    %2304 = vperm.xlu0 %2303, %v2221
    %v2305 = vpop.permute.xlu0 %2304
    %v2306 = vlaneseq
    %v2307 = vshrl.u32 %v2306, 7
    %v2308 = vadd.s32 %v2307, 112
    %2309 = vset.pattern.permute.xlu0 %v2308
    %2310 = vperm.xlu0 %2309, %v2221
    %v2311 = vpop.permute.xlu0 %2310
    %v2312 = vlaneseq
    %v2313 = vshrl.u32 %v2312, 7
    %v2314 = vadd.s32 %v2313, 120
    %2315 = vset.pattern.permute.xlu0 %v2314
    %2316 = vperm.xlu0 %2315, %v2221
    %v2317 = vpop.permute.xlu0 %2316
    %v2318 = vperm.slane %v2219, 1
    %v2319 = vlaneseq
    %v2320 = vshrl.u32 %v2319, 7
    %2322 = vset.pattern.permute.xlu0 %v2320
    %2323 = vperm.xlu0 %2322, %v2318
    %v2324 = vpop.permute.xlu0 %2323
    %v2325 = vlaneseq
    %v2326 = vshrl.u32 %v2325, 7
    %v2327 = vadd.s32 %v2326, 8
    %2328 = vset.pattern.permute.xlu0 %v2327
    %2329 = vperm.xlu0 %2328, %v2318
    %v2330 = vpop.permute.xlu0 %2329
    %v2331 = vlaneseq
    %v2332 = vshrl.u32 %v2331, 7
    %v2333 = vadd.s32 %v2332, 16
    %2334 = vset.pattern.permute.xlu0 %v2333
    %2335 = vperm.xlu0 %2334, %v2318
    %v2336 = vpop.permute.xlu0 %2335
    %v2337 = vlaneseq
    %v2338 = vshrl.u32 %v2337, 7
    %v2339 = vadd.s32 %v2338, 24
    %2340 = vset.pattern.permute.xlu0 %v2339
    %2341 = vperm.xlu0 %2340, %v2318
    %v2342 = vpop.permute.xlu0 %2341
    %v2343 = vlaneseq
    %v2344 = vshrl.u32 %v2343, 7
    %v2345 = vadd.s32 %v2344, 32
    %2346 = vset.pattern.permute.xlu0 %v2345
    %2347 = vperm.xlu0 %2346, %v2318
    %v2348 = vpop.permute.xlu0 %2347
    %v2349 = vlaneseq
    %v2350 = vshrl.u32 %v2349, 7
    %v2351 = vadd.s32 %v2350, 40
    %2352 = vset.pattern.permute.xlu0 %v2351
    %2353 = vperm.xlu0 %2352, %v2318
    %v2354 = vpop.permute.xlu0 %2353
    %v2355 = vlaneseq
    %v2356 = vshrl.u32 %v2355, 7
    %v2357 = vadd.s32 %v2356, 48
    %2358 = vset.pattern.permute.xlu0 %v2357
    %2359 = vperm.xlu0 %2358, %v2318
    %v2360 = vpop.permute.xlu0 %2359
    %v2361 = vlaneseq
    %v2362 = vshrl.u32 %v2361, 7
    %v2363 = vadd.s32 %v2362, 56
    %2364 = vset.pattern.permute.xlu0 %v2363
    %2365 = vperm.xlu0 %2364, %v2318
    %v2366 = vpop.permute.xlu0 %2365
    %v2367 = vlaneseq
    %v2368 = vshrl.u32 %v2367, 7
    %v2369 = vadd.s32 %v2368, 64
    %2370 = vset.pattern.permute.xlu0 %v2369
    %2371 = vperm.xlu0 %2370, %v2318
    %v2372 = vpop.permute.xlu0 %2371
    %v2373 = vlaneseq
    %v2374 = vshrl.u32 %v2373, 7
    %v2375 = vadd.s32 %v2374, 72
    %2376 = vset.pattern.permute.xlu0 %v2375
    %2377 = vperm.xlu0 %2376, %v2318
    %v2378 = vpop.permute.xlu0 %2377
    %v2379 = vlaneseq
    %v2380 = vshrl.u32 %v2379, 7
    %v2381 = vadd.s32 %v2380, 80
    %2382 = vset.pattern.permute.xlu0 %v2381
    %2383 = vperm.xlu0 %2382, %v2318
    %v2384 = vpop.permute.xlu0 %2383
    %v2385 = vlaneseq
    %v2386 = vshrl.u32 %v2385, 7
    %v2387 = vadd.s32 %v2386, 88
    %2388 = vset.pattern.permute.xlu0 %v2387
    %2389 = vperm.xlu0 %2388, %v2318
    %v2390 = vpop.permute.xlu0 %2389
    %v2391 = vlaneseq
    %v2392 = vshrl.u32 %v2391, 7
    %v2393 = vadd.s32 %v2392, 96
    %2394 = vset.pattern.permute.xlu0 %v2393
    %2395 = vperm.xlu0 %2394, %v2318
    %v2396 = vpop.permute.xlu0 %2395
    %v2397 = vlaneseq
    %v2398 = vshrl.u32 %v2397, 7
    %v2399 = vadd.s32 %v2398, 104
    %2400 = vset.pattern.permute.xlu0 %v2399
    %2401 = vperm.xlu0 %2400, %v2318
    %v2402 = vpop.permute.xlu0 %2401
    %v2403 = vlaneseq
    %v2404 = vshrl.u32 %v2403, 7
    %v2405 = vadd.s32 %v2404, 112
    %2406 = vset.pattern.permute.xlu0 %v2405
    %2407 = vperm.xlu0 %2406, %v2318
    %v2408 = vpop.permute.xlu0 %2407
    %v2409 = vlaneseq
    %v2410 = vshrl.u32 %v2409, 7
    %v2411 = vadd.s32 %v2410, 120
    %2412 = vset.pattern.permute.xlu0 %v2411
    %2413 = vperm.xlu0 %2412, %v2318
    %v2414 = vpop.permute.xlu0 %2413
    %v2415 = vperm.slane %v2219, 2
    %v2416 = vlaneseq
    %v2417 = vshrl.u32 %v2416, 7
    %2419 = vset.pattern.permute.xlu0 %v2417
    %2420 = vperm.xlu0 %2419, %v2415
    %v2421 = vpop.permute.xlu0 %2420
    %v2422 = vlaneseq
    %v2423 = vshrl.u32 %v2422, 7
    %v2424 = vadd.s32 %v2423, 8
    %2425 = vset.pattern.permute.xlu0 %v2424
    %2426 = vperm.xlu0 %2425, %v2415
    %v2427 = vpop.permute.xlu0 %2426
    %v2428 = vlaneseq
    %v2429 = vshrl.u32 %v2428, 7
    %v2430 = vadd.s32 %v2429, 16
    %2431 = vset.pattern.permute.xlu0 %v2430
    %2432 = vperm.xlu0 %2431, %v2415
    %v2433 = vpop.permute.xlu0 %2432
    %v2434 = vlaneseq
    %v2435 = vshrl.u32 %v2434, 7
    %v2436 = vadd.s32 %v2435, 24
    %2437 = vset.pattern.permute.xlu0 %v2436
    %2438 = vperm.xlu0 %2437, %v2415
    %v2439 = vpop.permute.xlu0 %2438
    %v2440 = vlaneseq
    %v2441 = vshrl.u32 %v2440, 7
    %v2442 = vadd.s32 %v2441, 32
    %2443 = vset.pattern.permute.xlu0 %v2442
    %2444 = vperm.xlu0 %2443, %v2415
    %v2445 = vpop.permute.xlu0 %2444
    %v2446 = vlaneseq
    %v2447 = vshrl.u32 %v2446, 7
    %v2448 = vadd.s32 %v2447, 40
    %2449 = vset.pattern.permute.xlu0 %v2448
    %2450 = vperm.xlu0 %2449, %v2415
    %v2451 = vpop.permute.xlu0 %2450
    %v2452 = vlaneseq
    %v2453 = vshrl.u32 %v2452, 7
    %v2454 = vadd.s32 %v2453, 48
    %2455 = vset.pattern.permute.xlu0 %v2454
    %2456 = vperm.xlu0 %2455, %v2415
    %v2457 = vpop.permute.xlu0 %2456
    %v2458 = vlaneseq
    %v2459 = vshrl.u32 %v2458, 7
    %v2460 = vadd.s32 %v2459, 56
    %2461 = vset.pattern.permute.xlu0 %v2460
    %2462 = vperm.xlu0 %2461, %v2415
    %v2463 = vpop.permute.xlu0 %2462
    %v2464 = vlaneseq
    %v2465 = vshrl.u32 %v2464, 7
    %v2466 = vadd.s32 %v2465, 64
    %2467 = vset.pattern.permute.xlu0 %v2466
    %2468 = vperm.xlu0 %2467, %v2415
    %v2469 = vpop.permute.xlu0 %2468
    %v2470 = vlaneseq
    %v2471 = vshrl.u32 %v2470, 7
    %v2472 = vadd.s32 %v2471, 72
    %2473 = vset.pattern.permute.xlu0 %v2472
    %2474 = vperm.xlu0 %2473, %v2415
    %v2475 = vpop.permute.xlu0 %2474
    %v2476 = vlaneseq
    %v2477 = vshrl.u32 %v2476, 7
    %v2478 = vadd.s32 %v2477, 80
    %2479 = vset.pattern.permute.xlu0 %v2478
    %2480 = vperm.xlu0 %2479, %v2415
    %v2481 = vpop.permute.xlu0 %2480
    %v2482 = vlaneseq
    %v2483 = vshrl.u32 %v2482, 7
    %v2484 = vadd.s32 %v2483, 88
    %2485 = vset.pattern.permute.xlu0 %v2484
    %2486 = vperm.xlu0 %2485, %v2415
    %v2487 = vpop.permute.xlu0 %2486
    %v2488 = vlaneseq
    %v2489 = vshrl.u32 %v2488, 7
    %v2490 = vadd.s32 %v2489, 96
    %2491 = vset.pattern.permute.xlu0 %v2490
    %2492 = vperm.xlu0 %2491, %v2415
    %v2493 = vpop.permute.xlu0 %2492
    %v2494 = vlaneseq
    %v2495 = vshrl.u32 %v2494, 7
    %v2496 = vadd.s32 %v2495, 104
    %2497 = vset.pattern.permute.xlu0 %v2496
    %2498 = vperm.xlu0 %2497, %v2415
    %v2499 = vpop.permute.xlu0 %2498
    %v2500 = vlaneseq
    %v2501 = vshrl.u32 %v2500, 7
    %v2502 = vadd.s32 %v2501, 112
    %2503 = vset.pattern.permute.xlu0 %v2502
    %2504 = vperm.xlu0 %2503, %v2415
    %v2505 = vpop.permute.xlu0 %2504
    %v2506 = vlaneseq
    %v2507 = vshrl.u32 %v2506, 7
    %v2508 = vadd.s32 %v2507, 120
    %2509 = vset.pattern.permute.xlu0 %v2508
    %2510 = vperm.xlu0 %2509, %v2415
    %v2511 = vpop.permute.xlu0 %2510
    %v2512 = vperm.slane %v2219, 3
    %v2513 = vlaneseq
    %v2514 = vshrl.u32 %v2513, 7
    %2516 = vset.pattern.permute.xlu0 %v2514
    %2517 = vperm.xlu0 %2516, %v2512
    %v2518 = vpop.permute.xlu0 %2517
    %v2519 = vlaneseq
    %v2520 = vshrl.u32 %v2519, 7
    %v2521 = vadd.s32 %v2520, 8
    %2522 = vset.pattern.permute.xlu0 %v2521
    %2523 = vperm.xlu0 %2522, %v2512
    %v2524 = vpop.permute.xlu0 %2523
    %v2525 = vlaneseq
    %v2526 = vshrl.u32 %v2525, 7
    %v2527 = vadd.s32 %v2526, 16
    %2528 = vset.pattern.permute.xlu0 %v2527
    %2529 = vperm.xlu0 %2528, %v2512
    %v2530 = vpop.permute.xlu0 %2529
    %v2531 = vlaneseq
    %v2532 = vshrl.u32 %v2531, 7
    %v2533 = vadd.s32 %v2532, 24
    %2534 = vset.pattern.permute.xlu0 %v2533
    %2535 = vperm.xlu0 %2534, %v2512
    %v2536 = vpop.permute.xlu0 %2535
    %v2537 = vlaneseq
    %v2538 = vshrl.u32 %v2537, 7
    %v2539 = vadd.s32 %v2538, 32
    %2540 = vset.pattern.permute.xlu0 %v2539
    %2541 = vperm.xlu0 %2540, %v2512
    %v2542 = vpop.permute.xlu0 %2541
    %v2543 = vlaneseq
    %v2544 = vshrl.u32 %v2543, 7
    %v2545 = vadd.s32 %v2544, 40
    %2546 = vset.pattern.permute.xlu0 %v2545
    %2547 = vperm.xlu0 %2546, %v2512
    %v2548 = vpop.permute.xlu0 %2547
    %v2549 = vlaneseq
    %v2550 = vshrl.u32 %v2549, 7
    %v2551 = vadd.s32 %v2550, 48
    %2552 = vset.pattern.permute.xlu0 %v2551
    %2553 = vperm.xlu0 %2552, %v2512
    %v2554 = vpop.permute.xlu0 %2553
    %v2555 = vlaneseq
    %v2556 = vshrl.u32 %v2555, 7
    %v2557 = vadd.s32 %v2556, 56
    %2558 = vset.pattern.permute.xlu0 %v2557
    %2559 = vperm.xlu0 %2558, %v2512
    %v2560 = vpop.permute.xlu0 %2559
    %v2561 = vlaneseq
    %v2562 = vshrl.u32 %v2561, 7
    %v2563 = vadd.s32 %v2562, 64
    %2564 = vset.pattern.permute.xlu0 %v2563
    %2565 = vperm.xlu0 %2564, %v2512
    %v2566 = vpop.permute.xlu0 %2565
    %v2567 = vlaneseq
    %v2568 = vshrl.u32 %v2567, 7
    %v2569 = vadd.s32 %v2568, 72
    %2570 = vset.pattern.permute.xlu0 %v2569
    %2571 = vperm.xlu0 %2570, %v2512
    %v2572 = vpop.permute.xlu0 %2571
    %v2573 = vlaneseq
    %v2574 = vshrl.u32 %v2573, 7
    %v2575 = vadd.s32 %v2574, 80
    %2576 = vset.pattern.permute.xlu0 %v2575
    %2577 = vperm.xlu0 %2576, %v2512
    %v2578 = vpop.permute.xlu0 %2577
    %v2579 = vlaneseq
    %v2580 = vshrl.u32 %v2579, 7
    %v2581 = vadd.s32 %v2580, 88
    %2582 = vset.pattern.permute.xlu0 %v2581
    %2583 = vperm.xlu0 %2582, %v2512
    %v2584 = vpop.permute.xlu0 %2583
    %v2585 = vlaneseq
    %v2586 = vshrl.u32 %v2585, 7
    %v2587 = vadd.s32 %v2586, 96
    %2588 = vset.pattern.permute.xlu0 %v2587
    %2589 = vperm.xlu0 %2588, %v2512
    %v2590 = vpop.permute.xlu0 %2589
    %v2591 = vlaneseq
    %v2592 = vshrl.u32 %v2591, 7
    %v2593 = vadd.s32 %v2592, 104
    %2594 = vset.pattern.permute.xlu0 %v2593
    %2595 = vperm.xlu0 %2594, %v2512
    %v2596 = vpop.permute.xlu0 %2595
    %v2597 = vlaneseq
    %v2598 = vshrl.u32 %v2597, 7
    %v2599 = vadd.s32 %v2598, 112
    %2600 = vset.pattern.permute.xlu0 %v2599
    %2601 = vperm.xlu0 %2600, %v2512
    %v2602 = vpop.permute.xlu0 %2601
    %v2603 = vlaneseq
    %v2604 = vshrl.u32 %v2603, 7
    %v2605 = vadd.s32 %v2604, 120
    %2606 = vset.pattern.permute.xlu0 %v2605
    %2607 = vperm.xlu0 %2606, %v2512
    %v2608 = vpop.permute.xlu0 %2607
    %v2609 = vperm.slane %v2219, 4
    %v2610 = vlaneseq
    %v2611 = vshrl.u32 %v2610, 7
    %2613 = vset.pattern.permute.xlu0 %v2611
    %2614 = vperm.xlu0 %2613, %v2609
    %v2615 = vpop.permute.xlu0 %2614
    %v2616 = vlaneseq
    %v2617 = vshrl.u32 %v2616, 7
    %v2618 = vadd.s32 %v2617, 8
    %2619 = vset.pattern.permute.xlu0 %v2618
    %2620 = vperm.xlu0 %2619, %v2609
    %v2621 = vpop.permute.xlu0 %2620
    %v2622 = vlaneseq
    %v2623 = vshrl.u32 %v2622, 7
    %v2624 = vadd.s32 %v2623, 16
    %2625 = vset.pattern.permute.xlu0 %v2624
    %2626 = vperm.xlu0 %2625, %v2609
    %v2627 = vpop.permute.xlu0 %2626
    %v2628 = vlaneseq
    %v2629 = vshrl.u32 %v2628, 7
    %v2630 = vadd.s32 %v2629, 24
    %2631 = vset.pattern.permute.xlu0 %v2630
    %2632 = vperm.xlu0 %2631, %v2609
    %v2633 = vpop.permute.xlu0 %2632
    %v2634 = vlaneseq
    %v2635 = vshrl.u32 %v2634, 7
    %v2636 = vadd.s32 %v2635, 32
    %2637 = vset.pattern.permute.xlu0 %v2636
    %2638 = vperm.xlu0 %2637, %v2609
    %v2639 = vpop.permute.xlu0 %2638
    %v2640 = vlaneseq
    %v2641 = vshrl.u32 %v2640, 7
    %v2642 = vadd.s32 %v2641, 40
    %2643 = vset.pattern.permute.xlu0 %v2642
    %2644 = vperm.xlu0 %2643, %v2609
    %v2645 = vpop.permute.xlu0 %2644
    %v2646 = vlaneseq
    %v2647 = vshrl.u32 %v2646, 7
    %v2648 = vadd.s32 %v2647, 48
    %2649 = vset.pattern.permute.xlu0 %v2648
    %2650 = vperm.xlu0 %2649, %v2609
    %v2651 = vpop.permute.xlu0 %2650
    %v2652 = vlaneseq
    %v2653 = vshrl.u32 %v2652, 7
    %v2654 = vadd.s32 %v2653, 56
    %2655 = vset.pattern.permute.xlu0 %v2654
    %2656 = vperm.xlu0 %2655, %v2609
    %v2657 = vpop.permute.xlu0 %2656
    %v2658 = vlaneseq
    %v2659 = vshrl.u32 %v2658, 7
    %v2660 = vadd.s32 %v2659, 64
    %2661 = vset.pattern.permute.xlu0 %v2660
    %2662 = vperm.xlu0 %2661, %v2609
    %v2663 = vpop.permute.xlu0 %2662
    %v2664 = vlaneseq
    %v2665 = vshrl.u32 %v2664, 7
    %v2666 = vadd.s32 %v2665, 72
    %2667 = vset.pattern.permute.xlu0 %v2666
    %2668 = vperm.xlu0 %2667, %v2609
    %v2669 = vpop.permute.xlu0 %2668
    %v2670 = vlaneseq
    %v2671 = vshrl.u32 %v2670, 7
    %v2672 = vadd.s32 %v2671, 80
    %2673 = vset.pattern.permute.xlu0 %v2672
    %2674 = vperm.xlu0 %2673, %v2609
    %v2675 = vpop.permute.xlu0 %2674
    %v2676 = vlaneseq
    %v2677 = vshrl.u32 %v2676, 7
    %v2678 = vadd.s32 %v2677, 88
    %2679 = vset.pattern.permute.xlu0 %v2678
    %2680 = vperm.xlu0 %2679, %v2609
    %v2681 = vpop.permute.xlu0 %2680
    %v2682 = vlaneseq
    %v2683 = vshrl.u32 %v2682, 7
    %v2684 = vadd.s32 %v2683, 96
    %2685 = vset.pattern.permute.xlu0 %v2684
    %2686 = vperm.xlu0 %2685, %v2609
    %v2687 = vpop.permute.xlu0 %2686
    %v2688 = vlaneseq
    %v2689 = vshrl.u32 %v2688, 7
    %v2690 = vadd.s32 %v2689, 104
    %2691 = vset.pattern.permute.xlu0 %v2690
    %2692 = vperm.xlu0 %2691, %v2609
    %v2693 = vpop.permute.xlu0 %2692
    %v2694 = vlaneseq
    %v2695 = vshrl.u32 %v2694, 7
    %v2696 = vadd.s32 %v2695, 112
    %2697 = vset.pattern.permute.xlu0 %v2696
    %2698 = vperm.xlu0 %2697, %v2609
    %v2699 = vpop.permute.xlu0 %2698
    %v2700 = vlaneseq
    %v2701 = vshrl.u32 %v2700, 7
    %v2702 = vadd.s32 %v2701, 120
    %2703 = vset.pattern.permute.xlu0 %v2702
    %2704 = vperm.xlu0 %2703, %v2609
    %v2705 = vpop.permute.xlu0 %2704
    %v2706 = vperm.slane %v2219, 5
    %v2707 = vlaneseq
    %v2708 = vshrl.u32 %v2707, 7
    %2710 = vset.pattern.permute.xlu0 %v2708
    %2711 = vperm.xlu0 %2710, %v2706
    %v2712 = vpop.permute.xlu0 %2711
    %v2713 = vlaneseq
    %v2714 = vshrl.u32 %v2713, 7
    %v2715 = vadd.s32 %v2714, 8
    %2716 = vset.pattern.permute.xlu0 %v2715
    %2717 = vperm.xlu0 %2716, %v2706
    %v2718 = vpop.permute.xlu0 %2717
    %v2719 = vlaneseq
    %v2720 = vshrl.u32 %v2719, 7
    %v2721 = vadd.s32 %v2720, 16
    %2722 = vset.pattern.permute.xlu0 %v2721
    %2723 = vperm.xlu0 %2722, %v2706
    %v2724 = vpop.permute.xlu0 %2723
    %v2725 = vlaneseq
    %v2726 = vshrl.u32 %v2725, 7
    %v2727 = vadd.s32 %v2726, 24
    %2728 = vset.pattern.permute.xlu0 %v2727
    %2729 = vperm.xlu0 %2728, %v2706
    %v2730 = vpop.permute.xlu0 %2729
    %v2731 = vlaneseq
    %v2732 = vshrl.u32 %v2731, 7
    %v2733 = vadd.s32 %v2732, 32
    %2734 = vset.pattern.permute.xlu0 %v2733
    %2735 = vperm.xlu0 %2734, %v2706
    %v2736 = vpop.permute.xlu0 %2735
    %v2737 = vlaneseq
    %v2738 = vshrl.u32 %v2737, 7
    %v2739 = vadd.s32 %v2738, 40
    %2740 = vset.pattern.permute.xlu0 %v2739
    %2741 = vperm.xlu0 %2740, %v2706
    %v2742 = vpop.permute.xlu0 %2741
    %v2743 = vlaneseq
    %v2744 = vshrl.u32 %v2743, 7
    %v2745 = vadd.s32 %v2744, 48
    %2746 = vset.pattern.permute.xlu0 %v2745
    %2747 = vperm.xlu0 %2746, %v2706
    %v2748 = vpop.permute.xlu0 %2747
    %v2749 = vlaneseq
    %v2750 = vshrl.u32 %v2749, 7
    %v2751 = vadd.s32 %v2750, 56
    %2752 = vset.pattern.permute.xlu0 %v2751
    %2753 = vperm.xlu0 %2752, %v2706
    %v2754 = vpop.permute.xlu0 %2753
    %v2755 = vlaneseq
    %v2756 = vshrl.u32 %v2755, 7
    %v2757 = vadd.s32 %v2756, 64
    %2758 = vset.pattern.permute.xlu0 %v2757
    %2759 = vperm.xlu0 %2758, %v2706
    %v2760 = vpop.permute.xlu0 %2759
    %v2761 = vlaneseq
    %v2762 = vshrl.u32 %v2761, 7
    %v2763 = vadd.s32 %v2762, 72
    %2764 = vset.pattern.permute.xlu0 %v2763
    %2765 = vperm.xlu0 %2764, %v2706
    %v2766 = vpop.permute.xlu0 %2765
    %v2767 = vlaneseq
    %v2768 = vshrl.u32 %v2767, 7
    %v2769 = vadd.s32 %v2768, 80
    %2770 = vset.pattern.permute.xlu0 %v2769
    %2771 = vperm.xlu0 %2770, %v2706
    %v2772 = vpop.permute.xlu0 %2771
    %v2773 = vlaneseq
    %v2774 = vshrl.u32 %v2773, 7
    %v2775 = vadd.s32 %v2774, 88
    %2776 = vset.pattern.permute.xlu0 %v2775
    %2777 = vperm.xlu0 %2776, %v2706
    %v2778 = vpop.permute.xlu0 %2777
    %v2779 = vlaneseq
    %v2780 = vshrl.u32 %v2779, 7
    %v2781 = vadd.s32 %v2780, 96
    %2782 = vset.pattern.permute.xlu0 %v2781
    %2783 = vperm.xlu0 %2782, %v2706
    %v2784 = vpop.permute.xlu0 %2783
    %v2785 = vlaneseq
    %v2786 = vshrl.u32 %v2785, 7
    %v2787 = vadd.s32 %v2786, 104
    %2788 = vset.pattern.permute.xlu0 %v2787
    %2789 = vperm.xlu0 %2788, %v2706
    %v2790 = vpop.permute.xlu0 %2789
    %v2791 = vlaneseq
    %v2792 = vshrl.u32 %v2791, 7
    %v2793 = vadd.s32 %v2792, 112
    %2794 = vset.pattern.permute.xlu0 %v2793
    %2795 = vperm.xlu0 %2794, %v2706
    %v2796 = vpop.permute.xlu0 %2795
    %v2797 = vlaneseq
    %v2798 = vshrl.u32 %v2797, 7
    %v2799 = vadd.s32 %v2798, 120
    %2800 = vset.pattern.permute.xlu0 %v2799
    %2801 = vperm.xlu0 %2800, %v2706
    %v2802 = vpop.permute.xlu0 %2801
    %v2803 = vperm.slane %v2219, 6
    %v2804 = vlaneseq
    %v2805 = vshrl.u32 %v2804, 7
    %2807 = vset.pattern.permute.xlu0 %v2805
    %2808 = vperm.xlu0 %2807, %v2803
    %v2809 = vpop.permute.xlu0 %2808
    %v2810 = vlaneseq
    %v2811 = vshrl.u32 %v2810, 7
    %v2812 = vadd.s32 %v2811, 8
    %2813 = vset.pattern.permute.xlu0 %v2812
    %2814 = vperm.xlu0 %2813, %v2803
    %v2815 = vpop.permute.xlu0 %2814
    %v2816 = vlaneseq
    %v2817 = vshrl.u32 %v2816, 7
    %v2818 = vadd.s32 %v2817, 16
    %2819 = vset.pattern.permute.xlu0 %v2818
    %2820 = vperm.xlu0 %2819, %v2803
    %v2821 = vpop.permute.xlu0 %2820
    %v2822 = vlaneseq
    %v2823 = vshrl.u32 %v2822, 7
    %v2824 = vadd.s32 %v2823, 24
    %2825 = vset.pattern.permute.xlu0 %v2824
    %2826 = vperm.xlu0 %2825, %v2803
    %v2827 = vpop.permute.xlu0 %2826
    %v2828 = vlaneseq
    %v2829 = vshrl.u32 %v2828, 7
    %v2830 = vadd.s32 %v2829, 32
    %2831 = vset.pattern.permute.xlu0 %v2830
    %2832 = vperm.xlu0 %2831, %v2803
    %v2833 = vpop.permute.xlu0 %2832
    %v2834 = vlaneseq
    %v2835 = vshrl.u32 %v2834, 7
    %v2836 = vadd.s32 %v2835, 40
    %2837 = vset.pattern.permute.xlu0 %v2836
    %2838 = vperm.xlu0 %2837, %v2803
    %v2839 = vpop.permute.xlu0 %2838
    %v2840 = vlaneseq
    %v2841 = vshrl.u32 %v2840, 7
    %v2842 = vadd.s32 %v2841, 48
    %2843 = vset.pattern.permute.xlu0 %v2842
    %2844 = vperm.xlu0 %2843, %v2803
    %v2845 = vpop.permute.xlu0 %2844
    %v2846 = vlaneseq
    %v2847 = vshrl.u32 %v2846, 7
    %v2848 = vadd.s32 %v2847, 56
    %2849 = vset.pattern.permute.xlu0 %v2848
    %2850 = vperm.xlu0 %2849, %v2803
    %v2851 = vpop.permute.xlu0 %2850
    %v2852 = vlaneseq
    %v2853 = vshrl.u32 %v2852, 7
    %v2854 = vadd.s32 %v2853, 64
    %2855 = vset.pattern.permute.xlu0 %v2854
    %2856 = vperm.xlu0 %2855, %v2803
    %v2857 = vpop.permute.xlu0 %2856
    %v2858 = vlaneseq
    %v2859 = vshrl.u32 %v2858, 7
    %v2860 = vadd.s32 %v2859, 72
    %2861 = vset.pattern.permute.xlu0 %v2860
    %2862 = vperm.xlu0 %2861, %v2803
    %v2863 = vpop.permute.xlu0 %2862
    %v2864 = vlaneseq
    %v2865 = vshrl.u32 %v2864, 7
    %v2866 = vadd.s32 %v2865, 80
    %2867 = vset.pattern.permute.xlu0 %v2866
    %2868 = vperm.xlu0 %2867, %v2803
    %v2869 = vpop.permute.xlu0 %2868
    %v2870 = vlaneseq
    %v2871 = vshrl.u32 %v2870, 7
    %v2872 = vadd.s32 %v2871, 88
    %2873 = vset.pattern.permute.xlu0 %v2872
    %2874 = vperm.xlu0 %2873, %v2803
    %v2875 = vpop.permute.xlu0 %2874
    %v2876 = vlaneseq
    %v2877 = vshrl.u32 %v2876, 7
    %v2878 = vadd.s32 %v2877, 96
    %2879 = vset.pattern.permute.xlu0 %v2878
    %2880 = vperm.xlu0 %2879, %v2803
    %v2881 = vpop.permute.xlu0 %2880
    %v2882 = vlaneseq
    %v2883 = vshrl.u32 %v2882, 7
    %v2884 = vadd.s32 %v2883, 104
    %2885 = vset.pattern.permute.xlu0 %v2884
    %2886 = vperm.xlu0 %2885, %v2803
    %v2887 = vpop.permute.xlu0 %2886
    %v2888 = vlaneseq
    %v2889 = vshrl.u32 %v2888, 7
    %v2890 = vadd.s32 %v2889, 112
    %2891 = vset.pattern.permute.xlu0 %v2890
    %2892 = vperm.xlu0 %2891, %v2803
    %v2893 = vpop.permute.xlu0 %2892
    %v2894 = vlaneseq
    %v2895 = vshrl.u32 %v2894, 7
    %v2896 = vadd.s32 %v2895, 120
    %2897 = vset.pattern.permute.xlu0 %v2896
    %2898 = vperm.xlu0 %2897, %v2803
    %v2899 = vpop.permute.xlu0 %2898
    %v2900 = vperm.slane %v2219, 7
    %v2901 = vlaneseq
    %v2902 = vshrl.u32 %v2901, 7
    %2904 = vset.pattern.permute.xlu0 %v2902
    %2905 = vperm.xlu0 %2904, %v2900
    %v2906 = vpop.permute.xlu0 %2905
    %v2907 = vlaneseq
    %v2908 = vshrl.u32 %v2907, 7
    %v2909 = vadd.s32 %v2908, 8
    %2910 = vset.pattern.permute.xlu0 %v2909
    %2911 = vperm.xlu0 %2910, %v2900
    %v2912 = vpop.permute.xlu0 %2911
    %v2913 = vlaneseq
    %v2914 = vshrl.u32 %v2913, 7
    %v2915 = vadd.s32 %v2914, 16
    %2916 = vset.pattern.permute.xlu0 %v2915
    %2917 = vperm.xlu0 %2916, %v2900
    %v2918 = vpop.permute.xlu0 %2917
    %v2919 = vlaneseq
    %v2920 = vshrl.u32 %v2919, 7
    %v2921 = vadd.s32 %v2920, 24
    %2922 = vset.pattern.permute.xlu0 %v2921
    %2923 = vperm.xlu0 %2922, %v2900
    %v2924 = vpop.permute.xlu0 %2923
    %v2925 = vlaneseq
    %v2926 = vshrl.u32 %v2925, 7
    %v2927 = vadd.s32 %v2926, 32
    %2928 = vset.pattern.permute.xlu0 %v2927
    %2929 = vperm.xlu0 %2928, %v2900
    %v2930 = vpop.permute.xlu0 %2929
    %v2931 = vlaneseq
    %v2932 = vshrl.u32 %v2931, 7
    %v2933 = vadd.s32 %v2932, 40
    %2934 = vset.pattern.permute.xlu0 %v2933
    %2935 = vperm.xlu0 %2934, %v2900
    %v2936 = vpop.permute.xlu0 %2935
    %v2937 = vlaneseq
    %v2938 = vshrl.u32 %v2937, 7
    %v2939 = vadd.s32 %v2938, 48
    %2940 = vset.pattern.permute.xlu0 %v2939
    %2941 = vperm.xlu0 %2940, %v2900
    %v2942 = vpop.permute.xlu0 %2941
    %v2943 = vlaneseq
    %v2944 = vshrl.u32 %v2943, 7
    %v2945 = vadd.s32 %v2944, 56
    %2946 = vset.pattern.permute.xlu0 %v2945
    %2947 = vperm.xlu0 %2946, %v2900
    %v2948 = vpop.permute.xlu0 %2947
    %v2949 = vlaneseq
    %v2950 = vshrl.u32 %v2949, 7
    %v2951 = vadd.s32 %v2950, 64
    %2952 = vset.pattern.permute.xlu0 %v2951
    %2953 = vperm.xlu0 %2952, %v2900
    %v2954 = vpop.permute.xlu0 %2953
    %v2955 = vlaneseq
    %v2956 = vshrl.u32 %v2955, 7
    %v2957 = vadd.s32 %v2956, 72
    %2958 = vset.pattern.permute.xlu0 %v2957
    %2959 = vperm.xlu0 %2958, %v2900
    %v2960 = vpop.permute.xlu0 %2959
    %v2961 = vlaneseq
    %v2962 = vshrl.u32 %v2961, 7
    %v2963 = vadd.s32 %v2962, 80
    %2964 = vset.pattern.permute.xlu0 %v2963
    %2965 = vperm.xlu0 %2964, %v2900
    %v2966 = vpop.permute.xlu0 %2965
    %v2967 = vlaneseq
    %v2968 = vshrl.u32 %v2967, 7
    %v2969 = vadd.s32 %v2968, 88
    %2970 = vset.pattern.permute.xlu0 %v2969
    %2971 = vperm.xlu0 %2970, %v2900
    %v2972 = vpop.permute.xlu0 %2971
    %v2973 = vlaneseq
    %v2974 = vshrl.u32 %v2973, 7
    %v2975 = vadd.s32 %v2974, 96
    %2976 = vset.pattern.permute.xlu0 %v2975
    %2977 = vperm.xlu0 %2976, %v2900
    %v2978 = vpop.permute.xlu0 %2977
    %v2979 = vlaneseq
    %v2980 = vshrl.u32 %v2979, 7
    %v2981 = vadd.s32 %v2980, 104
    %2982 = vset.pattern.permute.xlu0 %v2981
    %2983 = vperm.xlu0 %2982, %v2900
    %v2984 = vpop.permute.xlu0 %2983
    %v2985 = vlaneseq
    %v2986 = vshrl.u32 %v2985, 7
    %v2987 = vadd.s32 %v2986, 112
    %2988 = vset.pattern.permute.xlu0 %v2987
    %2989 = vperm.xlu0 %2988, %v2900
    %v2990 = vpop.permute.xlu0 %2989
    %v2991 = vlaneseq
    %v2992 = vshrl.u32 %v2991, 7
    %v2993 = vadd.s32 %v2992, 120
    %2994 = vset.pattern.permute.xlu0 %v2993
    %2995 = vperm.xlu0 %2994, %v2900
    %v2996 = vpop.permute.xlu0 %2995
    %v2997 = vmul.f32 %v2227, %v27
    %v2998 = vmul.f32 %v2233, %v28
    %v2999 = vmul.f32 %v2239, %v29
    %v3000 = vmul.f32 %v2245, %v30
    %v3001 = vmul.f32 %v2251, %v31
    %v3002 = vmul.f32 %v2257, %v32
    %v3003 = vmul.f32 %v2263, %v33
    %v3004 = vmul.f32 %v2269, %v34
    %v3005 = vmul.f32 %v2275, %v35
    %v3006 = vmul.f32 %v2281, %v36
    %v3007 = vmul.f32 %v2287, %v37
    %v3008 = vmul.f32 %v2293, %v38
    %v3009 = vmul.f32 %v2299, %v39
    %v3010 = vmul.f32 %v2305, %v40
    %v3011 = vmul.f32 %v2311, %v41
    %v3012 = vmul.f32 %v2317, %v42
    %v3013 = vmul.f32 %v2324, %v43
    %v3014 = vmul.f32 %v2330, %v44
    %v3015 = vmul.f32 %v2336, %v45
    %v3016 = vmul.f32 %v2342, %v46
    %v3017 = vmul.f32 %v2348, %v47
    %v3018 = vmul.f32 %v2354, %v48
    %v3019 = vmul.f32 %v2360, %v49
    %v3020 = vmul.f32 %v2366, %v50
    %v3021 = vmul.f32 %v2372, %v51
    %v3022 = vmul.f32 %v2378, %v52
    %v3023 = vmul.f32 %v2384, %v53
    %v3024 = vmul.f32 %v2390, %v54
    %v3025 = vmul.f32 %v2396, %v55
    %v3026 = vmul.f32 %v2402, %v56
    %v3027 = vmul.f32 %v2408, %v57
    %v3028 = vmul.f32 %v2414, %v58
    %v3029 = vmul.f32 %v2421, %v59
    %v3030 = vmul.f32 %v2427, %v60
    %v3031 = vmul.f32 %v2433, %v61
    %v3032 = vmul.f32 %v2439, %v62
    %v3033 = vmul.f32 %v2445, %v63
    %v3034 = vmul.f32 %v2451, %v64
    %v3035 = vmul.f32 %v2457, %v65
    %v3036 = vmul.f32 %v2463, %v66
    %v3037 = vmul.f32 %v2469, %v67
    %v3038 = vmul.f32 %v2475, %v68
    %v3039 = vmul.f32 %v2481, %v69
    %v3040 = vmul.f32 %v2487, %v70
    %v3041 = vmul.f32 %v2493, %v71
    %v3042 = vmul.f32 %v2499, %v72
    %v3043 = vmul.f32 %v2505, %v73
    %v3044 = vmul.f32 %v2511, %v74
    %v3045 = vmul.f32 %v2518, %v75
    %v3046 = vmul.f32 %v2524, %v76
    %v3047 = vmul.f32 %v2530, %v77
    %v3048 = vmul.f32 %v2536, %v78
    %v3049 = vmul.f32 %v2542, %v79
    %v3050 = vmul.f32 %v2548, %v80
    %v3051 = vmul.f32 %v2554, %v81
    %v3052 = vmul.f32 %v2560, %v82
    %v3053 = vmul.f32 %v2566, %v83
    %v3054 = vmul.f32 %v2572, %v84
    %v3055 = vmul.f32 %v2578, %v85
    %v3056 = vmul.f32 %v2584, %v86
    %v3057 = vmul.f32 %v2590, %v87
    %v3058 = vmul.f32 %v2596, %v88
    %v3059 = vmul.f32 %v2602, %v89
    %v3060 = vmul.f32 %v2608, %v90
    %v3061 = vmul.f32 %v2615, %v91
    %v3062 = vmul.f32 %v2621, %v92
    %v3063 = vmul.f32 %v2627, %v93
    %v3064 = vmul.f32 %v2633, %v94
    %v3065 = vmul.f32 %v2639, %v95
    %v3066 = vmul.f32 %v2645, %v96
    %v3067 = vmul.f32 %v2651, %v97
    %v3068 = vmul.f32 %v2657, %v98
    %v3069 = vmul.f32 %v2663, %v99
    %v3070 = vmul.f32 %v2669, %v100
    %v3071 = vmul.f32 %v2675, %v101
    %v3072 = vmul.f32 %v2681, %v102
    %v3073 = vmul.f32 %v2687, %v103
    %v3074 = vmul.f32 %v2693, %v104
    %v3075 = vmul.f32 %v2699, %v105
    %v3076 = vmul.f32 %v2705, %v106
    %v3077 = vmul.f32 %v2712, %v107
    %v3078 = vmul.f32 %v2718, %v108
    %v3079 = vmul.f32 %v2724, %v109
    %v3080 = vmul.f32 %v2730, %v110
    %v3081 = vmul.f32 %v2736, %v111
    %v3082 = vmul.f32 %v2742, %v112
    %v3083 = vmul.f32 %v2748, %v113
    %v3084 = vmul.f32 %v2754, %v114
    %v3085 = vmul.f32 %v2760, %v115
    %v3086 = vmul.f32 %v2766, %v116
    %v3087 = vmul.f32 %v2772, %v117
    %v3088 = vmul.f32 %v2778, %v118
    %v3089 = vmul.f32 %v2784, %v119
    %v3090 = vmul.f32 %v2790, %v120
    %v3091 = vmul.f32 %v2796, %v121
    %v3092 = vmul.f32 %v2802, %v122
    %v3093 = vmul.f32 %v2809, %v123
    %v3094 = vmul.f32 %v2815, %v124
    %v3095 = vmul.f32 %v2821, %v125
    %v3096 = vmul.f32 %v2827, %v126
    %v3097 = vmul.f32 %v2833, %v127
    %v3098 = vmul.f32 %v2839, %v128
    %v3099 = vmul.f32 %v2845, %v129
    %v3100 = vmul.f32 %v2851, %v130
    %v3101 = vmul.f32 %v2857, %v131
    %v3102 = vmul.f32 %v2863, %v132
    %v3103 = vmul.f32 %v2869, %v133
    %v3104 = vmul.f32 %v2875, %v134
    %v3105 = vmul.f32 %v2881, %v135
    %v3106 = vmul.f32 %v2887, %v136
    %v3107 = vmul.f32 %v2893, %v137
    %v3108 = vmul.f32 %v2899, %v138
    %v3109 = vmul.f32 %v2906, %v139
    %v3110 = vmul.f32 %v2912, %v140
    %v3111 = vmul.f32 %v2918, %v141
    %v3112 = vmul.f32 %v2924, %v142
    %v3113 = vmul.f32 %v2930, %v143
    %v3114 = vmul.f32 %v2936, %v144
    %v3115 = vmul.f32 %v2942, %v145
    %v3116 = vmul.f32 %v2948, %v146
    %v3117 = vmul.f32 %v2954, %v147
    %v3118 = vmul.f32 %v2960, %v148
    %v3119 = vmul.f32 %v2966, %v149
    %v3120 = vmul.f32 %v2972, %v150
    %v3121 = vmul.f32 %v2978, %v151
    %v3122 = vmul.f32 %v2984, %v152
    %v3123 = vmul.f32 %v2990, %v153
    %v3124 = vmul.f32 %v2996, %v154
    %v3125 = vsel %vm160, %v2997, 0.0
    %v3126 = vsel %vm160, %v2998, 0.0
    %v3127 = vadd.f32 %v3125, %v3126
    %v3128 = vsel %vm160, %v2999, 0.0
    %v3129 = vadd.f32 %v3127, %v3128
    %v3130 = vsel %vm160, %v3000, 0.0
    %v3131 = vadd.f32 %v3129, %v3130
    %v3132 = vsel %vm160, %v3001, 0.0
    %v3133 = vadd.f32 %v3131, %v3132
    %v3134 = vsel %vm160, %v3002, 0.0
    %v3135 = vadd.f32 %v3133, %v3134
    %v3136 = vsel %vm160, %v3003, 0.0
    %v3137 = vadd.f32 %v3135, %v3136
    %v3138 = vsel %vm160, %v3004, 0.0
    %v3139 = vadd.f32 %v3137, %v3138
    %v3140 = vsel %vm160, %v3005, 0.0
    %v3141 = vadd.f32 %v3139, %v3140
    %v3142 = vsel %vm160, %v3006, 0.0
    %v3143 = vadd.f32 %v3141, %v3142
    %v3144 = vsel %vm160, %v3007, 0.0
    %v3145 = vadd.f32 %v3143, %v3144
    %v3146 = vsel %vm160, %v3008, 0.0
    %v3147 = vadd.f32 %v3145, %v3146
    %v3148 = vsel %vm160, %v3009, 0.0
    %v3149 = vadd.f32 %v3147, %v3148
    %v3150 = vsel %vm160, %v3010, 0.0
    %v3151 = vadd.f32 %v3149, %v3150
    %v3152 = vsel %vm160, %v3011, 0.0
    %v3153 = vadd.f32 %v3151, %v3152
    %v3154 = vsel %vm160, %v3012, 0.0
    %v3155 = vadd.f32 %v3153, %v3154
    %v3156 = vrot.slane %v3155, 4
    %v3157 = vadd.f32 %v3155, %v3156
    %v3158 = vrot.slane %v3157, 2
    %v3159 = vadd.f32 %v3157, %v3158
    %v3160 = vrot.slane %v3159, 1
    %v3161 = vadd.f32 %v3159, %v3160
    %v3162 = vsel %vm160, %v3013, 0.0
    %v3163 = vsel %vm160, %v3014, 0.0
    %v3164 = vadd.f32 %v3162, %v3163
    %v3165 = vsel %vm160, %v3015, 0.0
    %v3166 = vadd.f32 %v3164, %v3165
    %v3167 = vsel %vm160, %v3016, 0.0
    %v3168 = vadd.f32 %v3166, %v3167
    %v3169 = vsel %vm160, %v3017, 0.0
    %v3170 = vadd.f32 %v3168, %v3169
    %v3171 = vsel %vm160, %v3018, 0.0
    %v3172 = vadd.f32 %v3170, %v3171
    %v3173 = vsel %vm160, %v3019, 0.0
    %v3174 = vadd.f32 %v3172, %v3173
    %v3175 = vsel %vm160, %v3020, 0.0
    %v3176 = vadd.f32 %v3174, %v3175
    %v3177 = vsel %vm160, %v3021, 0.0
    %v3178 = vadd.f32 %v3176, %v3177
    %v3179 = vsel %vm160, %v3022, 0.0
    %v3180 = vadd.f32 %v3178, %v3179
    %v3181 = vsel %vm160, %v3023, 0.0
    %v3182 = vadd.f32 %v3180, %v3181
    %v3183 = vsel %vm160, %v3024, 0.0
    %v3184 = vadd.f32 %v3182, %v3183
    %v3185 = vsel %vm160, %v3025, 0.0
    %v3186 = vadd.f32 %v3184, %v3185
    %v3187 = vsel %vm160, %v3026, 0.0
    %v3188 = vadd.f32 %v3186, %v3187
    %v3189 = vsel %vm160, %v3027, 0.0
    %v3190 = vadd.f32 %v3188, %v3189
    %v3191 = vsel %vm160, %v3028, 0.0
    %v3192 = vadd.f32 %v3190, %v3191
    %v3193 = vrot.slane %v3192, 4
    %v3194 = vadd.f32 %v3192, %v3193
    %v3195 = vrot.slane %v3194, 2
    %v3196 = vadd.f32 %v3194, %v3195
    %v3197 = vrot.slane %v3196, 1
    %v3198 = vadd.f32 %v3196, %v3197
    %v3199 = vsel %vm160, %v3029, 0.0
    %v3200 = vsel %vm160, %v3030, 0.0
    %v3201 = vadd.f32 %v3199, %v3200
    %v3202 = vsel %vm160, %v3031, 0.0
    %v3203 = vadd.f32 %v3201, %v3202
    %v3204 = vsel %vm160, %v3032, 0.0
    %v3205 = vadd.f32 %v3203, %v3204
    %v3206 = vsel %vm160, %v3033, 0.0
    %v3207 = vadd.f32 %v3205, %v3206
    %v3208 = vsel %vm160, %v3034, 0.0
    %v3209 = vadd.f32 %v3207, %v3208
    %v3210 = vsel %vm160, %v3035, 0.0
    %v3211 = vadd.f32 %v3209, %v3210
    %v3212 = vsel %vm160, %v3036, 0.0
    %v3213 = vadd.f32 %v3211, %v3212
    %v3214 = vsel %vm160, %v3037, 0.0
    %v3215 = vadd.f32 %v3213, %v3214
    %v3216 = vsel %vm160, %v3038, 0.0
    %v3217 = vadd.f32 %v3215, %v3216
    %v3218 = vsel %vm160, %v3039, 0.0
    %v3219 = vadd.f32 %v3217, %v3218
    %v3220 = vsel %vm160, %v3040, 0.0
    %v3221 = vadd.f32 %v3219, %v3220
    %v3222 = vsel %vm160, %v3041, 0.0
    %v3223 = vadd.f32 %v3221, %v3222
    %v3224 = vsel %vm160, %v3042, 0.0
    %v3225 = vadd.f32 %v3223, %v3224
    %v3226 = vsel %vm160, %v3043, 0.0
    %v3227 = vadd.f32 %v3225, %v3226
    %v3228 = vsel %vm160, %v3044, 0.0
    %v3229 = vadd.f32 %v3227, %v3228
    %v3230 = vrot.slane %v3229, 4
    %v3231 = vadd.f32 %v3229, %v3230
    %v3232 = vrot.slane %v3231, 2
    %v3233 = vadd.f32 %v3231, %v3232
    %v3234 = vrot.slane %v3233, 1
    %v3235 = vadd.f32 %v3233, %v3234
    %v3236 = vsel %vm160, %v3045, 0.0
    %v3237 = vsel %vm160, %v3046, 0.0
    %v3238 = vadd.f32 %v3236, %v3237
    %v3239 = vsel %vm160, %v3047, 0.0
    %v3240 = vadd.f32 %v3238, %v3239
    %v3241 = vsel %vm160, %v3048, 0.0
    %v3242 = vadd.f32 %v3240, %v3241
    %v3243 = vsel %vm160, %v3049, 0.0
    %v3244 = vadd.f32 %v3242, %v3243
    %v3245 = vsel %vm160, %v3050, 0.0
    %v3246 = vadd.f32 %v3244, %v3245
    %v3247 = vsel %vm160, %v3051, 0.0
    %v3248 = vadd.f32 %v3246, %v3247
    %v3249 = vsel %vm160, %v3052, 0.0
    %v3250 = vadd.f32 %v3248, %v3249
    %v3251 = vsel %vm160, %v3053, 0.0
    %v3252 = vadd.f32 %v3250, %v3251
    %v3253 = vsel %vm160, %v3054, 0.0
    %v3254 = vadd.f32 %v3252, %v3253
    %v3255 = vsel %vm160, %v3055, 0.0
    %v3256 = vadd.f32 %v3254, %v3255
    %v3257 = vsel %vm160, %v3056, 0.0
    %v3258 = vadd.f32 %v3256, %v3257
    %v3259 = vsel %vm160, %v3057, 0.0
    %v3260 = vadd.f32 %v3258, %v3259
    %v3261 = vsel %vm160, %v3058, 0.0
    %v3262 = vadd.f32 %v3260, %v3261
    %v3263 = vsel %vm160, %v3059, 0.0
    %v3264 = vadd.f32 %v3262, %v3263
    %v3265 = vsel %vm160, %v3060, 0.0
    %v3266 = vadd.f32 %v3264, %v3265
    %v3267 = vrot.slane %v3266, 4
    %v3268 = vadd.f32 %v3266, %v3267
    %v3269 = vrot.slane %v3268, 2
    %v3270 = vadd.f32 %v3268, %v3269
    %v3271 = vrot.slane %v3270, 1
    %v3272 = vadd.f32 %v3270, %v3271
    %v3273 = vsel %vm160, %v3061, 0.0
    %v3274 = vsel %vm160, %v3062, 0.0
    %v3275 = vadd.f32 %v3273, %v3274
    %v3276 = vsel %vm160, %v3063, 0.0
    %v3277 = vadd.f32 %v3275, %v3276
    %v3278 = vsel %vm160, %v3064, 0.0
    %v3279 = vadd.f32 %v3277, %v3278
    %v3280 = vsel %vm160, %v3065, 0.0
    %v3281 = vadd.f32 %v3279, %v3280
    %v3282 = vsel %vm160, %v3066, 0.0
    %v3283 = vadd.f32 %v3281, %v3282
    %v3284 = vsel %vm160, %v3067, 0.0
    %v3285 = vadd.f32 %v3283, %v3284
    %v3286 = vsel %vm160, %v3068, 0.0
    %v3287 = vadd.f32 %v3285, %v3286
    %v3288 = vsel %vm160, %v3069, 0.0
    %v3289 = vadd.f32 %v3287, %v3288
    %v3290 = vsel %vm160, %v3070, 0.0
    %v3291 = vadd.f32 %v3289, %v3290
    %v3292 = vsel %vm160, %v3071, 0.0
    %v3293 = vadd.f32 %v3291, %v3292
    %v3294 = vsel %vm160, %v3072, 0.0
    %v3295 = vadd.f32 %v3293, %v3294
    %v3296 = vsel %vm160, %v3073, 0.0
    %v3297 = vadd.f32 %v3295, %v3296
    %v3298 = vsel %vm160, %v3074, 0.0
    %v3299 = vadd.f32 %v3297, %v3298
    %v3300 = vsel %vm160, %v3075, 0.0
    %v3301 = vadd.f32 %v3299, %v3300
    %v3302 = vsel %vm160, %v3076, 0.0
    %v3303 = vadd.f32 %v3301, %v3302
    %v3304 = vrot.slane %v3303, 4
    %v3305 = vadd.f32 %v3303, %v3304
    %v3306 = vrot.slane %v3305, 2
    %v3307 = vadd.f32 %v3305, %v3306
    %v3308 = vrot.slane %v3307, 1
    %v3309 = vadd.f32 %v3307, %v3308
    %v3310 = vsel %vm160, %v3077, 0.0
    %v3311 = vsel %vm160, %v3078, 0.0
    %v3312 = vadd.f32 %v3310, %v3311
    %v3313 = vsel %vm160, %v3079, 0.0
    %v3314 = vadd.f32 %v3312, %v3313
    %v3315 = vsel %vm160, %v3080, 0.0
    %v3316 = vadd.f32 %v3314, %v3315
    %v3317 = vsel %vm160, %v3081, 0.0
    %v3318 = vadd.f32 %v3316, %v3317
    %v3319 = vsel %vm160, %v3082, 0.0
    %v3320 = vadd.f32 %v3318, %v3319
    %v3321 = vsel %vm160, %v3083, 0.0
    %v3322 = vadd.f32 %v3320, %v3321
    %v3323 = vsel %vm160, %v3084, 0.0
    %v3324 = vadd.f32 %v3322, %v3323
    %v3325 = vsel %vm160, %v3085, 0.0
    %v3326 = vadd.f32 %v3324, %v3325
    %v3327 = vsel %vm160, %v3086, 0.0
    %v3328 = vadd.f32 %v3326, %v3327
    %v3329 = vsel %vm160, %v3087, 0.0
    %v3330 = vadd.f32 %v3328, %v3329
    %v3331 = vsel %vm160, %v3088, 0.0
    %v3332 = vadd.f32 %v3330, %v3331
    %v3333 = vsel %vm160, %v3089, 0.0
    %v3334 = vadd.f32 %v3332, %v3333
    %v3335 = vsel %vm160, %v3090, 0.0
    %v3336 = vadd.f32 %v3334, %v3335
    %v3337 = vsel %vm160, %v3091, 0.0
    %v3338 = vadd.f32 %v3336, %v3337
    %v3339 = vsel %vm160, %v3092, 0.0
    %v3340 = vadd.f32 %v3338, %v3339
    %v3341 = vrot.slane %v3340, 4
    %v3342 = vadd.f32 %v3340, %v3341
    %v3343 = vrot.slane %v3342, 2
    %v3344 = vadd.f32 %v3342, %v3343
    %v3345 = vrot.slane %v3344, 1
    %v3346 = vadd.f32 %v3344, %v3345
    %v3347 = vsel %vm160, %v3093, 0.0
    %v3348 = vsel %vm160, %v3094, 0.0
    %v3349 = vadd.f32 %v3347, %v3348
    %v3350 = vsel %vm160, %v3095, 0.0
    %v3351 = vadd.f32 %v3349, %v3350
    %v3352 = vsel %vm160, %v3096, 0.0
    %v3353 = vadd.f32 %v3351, %v3352
    %v3354 = vsel %vm160, %v3097, 0.0
    %v3355 = vadd.f32 %v3353, %v3354
    %v3356 = vsel %vm160, %v3098, 0.0
    %v3357 = vadd.f32 %v3355, %v3356
    %v3358 = vsel %vm160, %v3099, 0.0
    %v3359 = vadd.f32 %v3357, %v3358
    %v3360 = vsel %vm160, %v3100, 0.0
    %v3361 = vadd.f32 %v3359, %v3360
    %v3362 = vsel %vm160, %v3101, 0.0
    %v3363 = vadd.f32 %v3361, %v3362
    %v3364 = vsel %vm160, %v3102, 0.0
    %v3365 = vadd.f32 %v3363, %v3364
    %v3366 = vsel %vm160, %v3103, 0.0
    %v3367 = vadd.f32 %v3365, %v3366
    %v3368 = vsel %vm160, %v3104, 0.0
    %v3369 = vadd.f32 %v3367, %v3368
    %v3370 = vsel %vm160, %v3105, 0.0
    %v3371 = vadd.f32 %v3369, %v3370
    %v3372 = vsel %vm160, %v3106, 0.0
    %v3373 = vadd.f32 %v3371, %v3372
    %v3374 = vsel %vm160, %v3107, 0.0
    %v3375 = vadd.f32 %v3373, %v3374
    %v3376 = vsel %vm160, %v3108, 0.0
    %v3377 = vadd.f32 %v3375, %v3376
    %v3378 = vrot.slane %v3377, 4
    %v3379 = vadd.f32 %v3377, %v3378
    %v3380 = vrot.slane %v3379, 2
    %v3381 = vadd.f32 %v3379, %v3380
    %v3382 = vrot.slane %v3381, 1
    %v3383 = vadd.f32 %v3381, %v3382
    %v3384 = vsel %vm160, %v3109, 0.0
    %v3385 = vsel %vm160, %v3110, 0.0
    %v3386 = vadd.f32 %v3384, %v3385
    %v3387 = vsel %vm160, %v3111, 0.0
    %v3388 = vadd.f32 %v3386, %v3387
    %v3389 = vsel %vm160, %v3112, 0.0
    %v3390 = vadd.f32 %v3388, %v3389
    %v3391 = vsel %vm160, %v3113, 0.0
    %v3392 = vadd.f32 %v3390, %v3391
    %v3393 = vsel %vm160, %v3114, 0.0
    %v3394 = vadd.f32 %v3392, %v3393
    %v3395 = vsel %vm160, %v3115, 0.0
    %v3396 = vadd.f32 %v3394, %v3395
    %v3397 = vsel %vm160, %v3116, 0.0
    %v3398 = vadd.f32 %v3396, %v3397
    %v3399 = vsel %vm160, %v3117, 0.0
    %v3400 = vadd.f32 %v3398, %v3399
    %v3401 = vsel %vm160, %v3118, 0.0
    %v3402 = vadd.f32 %v3400, %v3401
    %v3403 = vsel %vm160, %v3119, 0.0
    %v3404 = vadd.f32 %v3402, %v3403
    %v3405 = vsel %vm160, %v3120, 0.0
    %v3406 = vadd.f32 %v3404, %v3405
    %v3407 = vsel %vm160, %v3121, 0.0
    %v3408 = vadd.f32 %v3406, %v3407
    %v3409 = vsel %vm160, %v3122, 0.0
    %v3410 = vadd.f32 %v3408, %v3409
    %v3411 = vsel %vm160, %v3123, 0.0
    %v3412 = vadd.f32 %v3410, %v3411
    %v3413 = vsel %vm160, %v3124, 0.0
    %v3414 = vadd.f32 %v3412, %v3413
    %v3415 = vrot.slane %v3414, 4
    %v3416 = vadd.f32 %v3414, %v3415
    %v3417 = vrot.slane %v3416, 2
    %v3418 = vadd.f32 %v3416, %v3417
    %v3419 = vrot.slane %v3418, 1
    %v3420 = vadd.f32 %v3418, %v3419
    %v3429 = vsel %vm2182, %v3198, %v3161
    %v3430 = vsel %vm2184, %v3235, %v3429
    %v3431 = vsel %vm2186, %v3272, %v3430
    %v3432 = vsel %vm2188, %v3309, %v3431
    %v3433 = vsel %vm2190, %v3346, %v3432
    %v3434 = vsel %vm2192, %v3383, %v3433
    %v3435 = vsel %vm2194, %v3420, %v3434
    %3437 = vst.msk [vmem:[#allocation2] sm:$0xff] %vm160, %v3435
    // Predicated region
    $region26: #{tpu_custom_call.1} parent=1 // pred_check
      _
    $region27: #{tpu_custom_call.1} parent=1 // pred_check_branch
      %3439 = sbr.rel (0) target = $region29
    $region28: #{tpu_custom_call.1} parent=1 // pred_region
      %3441 = vsyncadd [#allocation3], 0
      %s3443 = sshll.u32 [#allocation2], 4
      %s3444 = int_to_ptr.vmem [resolvable:$true] %s3443
      %s3445 = sshll.u32 %s6, 4
      %s3446 = int_to_ptr.hbm [resolvable:$true] %s3445
      %3448 = dma.vmem_to_hbm [thread:$0]  %s3444, 128, %s3446, [#allocation3]
    $region29: #{tpu_custom_call.1} parent=1 // pred_fallthru
      _
    // Predicated region
    $region30: #{tpu_custom_call.1} parent=1 // pred_check
      _
    $region31: #{tpu_custom_call.1} parent=1 // pred_check_branch
      %3450 = sbr.rel (0) target = $region33
    $region32: #{tpu_custom_call.1} parent=1 // pred_region
      %3452 = vsyncadd [#allocation5], 0
      %s3454 = sshll.u32 [#allocation4], 4
      %s3455 = int_to_ptr.vmem [resolvable:$true] %s3454
      %s3456 = sshll.u32 %s7, 4
      %s3457 = int_to_ptr.hbm [resolvable:$true] %s3456
      %3459 = dma.vmem_to_hbm [thread:$0]  %s3455, 128, %s3457, [#allocation5]
    $region33: #{tpu_custom_call.1} parent=1 // pred_fallthru
      _
    // Predicated region
    $region34: #{tpu_custom_call.1} parent=1 // pred_check
      _
    $region35: #{tpu_custom_call.1} parent=1 // pred_check_branch
      %3461 = sbr.rel (0) target = $region37
    $region36: #{tpu_custom_call.1} parent=1 // pred_region
      %3463 = dma.done [#allocation3], 128
    $region37: #{tpu_custom_call.1} parent=1 // pred_fallthru
      _
    // Predicated region
    $region38: #{tpu_custom_call.1} parent=1 // pred_check
      _
    $region39: #{tpu_custom_call.1} parent=1 // pred_check_branch
      %3465 = sbr.rel (0) target = $region41
    $region40: #{tpu_custom_call.1} parent=1 // pred_region
      %3467 = dma.done [#allocation5], 128
    $region41: #{tpu_custom_call.1} parent=1 // pred_fallthru
      _
    %3468 = vsyncpa [#allocation3], 1
    %3469 = vsyncpa [#allocation5], 1

</llo_original>
